<compile_context>
chip_gen: v6e
topology: v6e:2x2x1
jax: 0.10.0
libtpu: 0.0.40
codegen_flags: <defaults>
</compile_context>

<pallas_src>
import functools
import math

import jax
import jax.numpy as jnp
from jax import lax
from jax.experimental import pallas as pl
from jax.experimental.pallas import tpu as pltpu


# ----------------------------------------------------------------------------
# Fused decoder-layer kernel: one batch element per grid step, all stages in
# VMEM.  Every sequence tensor is packed as [real | imag] along the last dim.
# ----------------------------------------------------------------------------
def _fused_decoder_kernel(tgt_ref, mem_ref, pos_ref, wself_ref, wcross_ref,
                          out_ref, *, D, Dk, num_imgs, hw,
                          norm_scale, norm_eps, temp):
    f32 = jnp.float32
    L = num_imgs * hw

    tgt = tgt_ref[0].astype(f32)            # (L,  2D)  packed [real | imag]
    mem = mem_ref[0].astype(f32)            # (Lm, 2D)
    pos = pos_ref[0].astype(f32)            # (Lm, 2D)
    w_self = wself_ref[...].astype(f32)     # (2D, 2Dk) combined complex weight
    w_cross = wcross_ref[...].astype(f32)   # (2D, 2Dk)
    Lm = mem.shape[0]

    # hoisted lane masks / constants (reused by every call site below)
    sign_k = jnp.where(
        lax.broadcasted_iota(jnp.int32, (1, 2 * Dk), 1) < Dk, 1.0, -1.0)
    half3 = lax.broadcasted_iota(jnp.int32, (1, 1, 2 * D), 2) < D
    norm_const = norm_scale * math.sqrt(D * hw)

    def project_norm(x, w):
        # complex projection as ONE matmul:
        #   [xr | xi] @ [[Wr, Wi], [-Wi, Wr]] = [xr@Wr - xi@Wi | xr@Wi + xi@Wr]
        p = jnp.dot(x, w, preferred_element_type=f32)              # (M, 2Dk)
        # joint complex L2 norm over the key-feature dim (real^2 + imag^2)
        n = lax.rsqrt(jnp.sum(p * p, axis=-1, keepdims=True) + 1e-12)
        return p * n

    def attn_maps(pq, pk, Lk):
        # single dot_general for dr AND di against a row-stacked key operand:
        #   k_dr = [kr | -ki] (sign mask), k_di = [ki | kr] (128-aligned swap)
        k_dr = pk * sign_k
        k_di = jnp.concatenate([pk[:, Dk:], pk[:, :Dk]], axis=-1)
        k_stack = jnp.concatenate([k_dr, k_di], axis=0)            # (2Lk, 2Dk)
        d = lax.dot_general(pq, k_stack, (((1,), (1,)), ((), ())),
                            preferred_element_type=f32)            # (M, 2Lk)
        # per-half softmax on the fused layout via lane masks (no lane slices)
        x = d * temp
        left = lax.broadcasted_iota(jnp.int32, x.shape, 1) < Lk
        m_r = jnp.max(jnp.where(left, x, -jnp.inf), axis=-1, keepdims=True)
        m_i = jnp.max(jnp.where(left, -jnp.inf, x), axis=-1, keepdims=True)
        e = jnp.exp(x - jnp.where(left, m_r, m_i))
        s_r = jnp.sum(jnp.where(left, e, 0.0), axis=-1, keepdims=True)
        s_i = jnp.sum(jnp.where(left, 0.0, e), axis=-1, keepdims=True)
        return e / jnp.where(left, s_r, s_i)          # (M, 2Lk) = [ar | ai]

    def rot(v):
        # [vr | vi] -> [-vi | vr]   (complex "multiply by i" of the values)
        return jnp.concatenate([-v[:, D:], v[:, :D]], axis=-1)

    def inst_norm(x):
        # independent L2 instance norm of the real and imag halves; one
        # (dim, h, w) instance per consecutive hw-row chunk (per num_img).
        x3 = x.reshape(num_imgs, hw, 2 * D)
        s2 = jnp.sum(x3 * x3, axis=1, keepdims=True)               # (ni,1,2D)
        ss_r = jnp.sum(jnp.where(half3, s2, 0.0), axis=2, keepdims=True)
        ss_i = jnp.sum(jnp.where(half3, 0.0, s2), axis=2, keepdims=True)
        fac = norm_const * lax.rsqrt(jnp.where(half3, ss_r, ss_i) + norm_eps)
        return (x3 * fac).reshape(L, 2 * D)

    # ---- self-attention: q = k = v = tgt; projection shared between q/k ----
    p_t = project_norm(tgt, w_self)
    a_s = attn_maps(p_t, p_t, L)                                   # (L, 2L)
    v_s = jnp.concatenate([tgt, rot(tgt)], axis=0)                 # (2L, 2D)
    tgt2 = jnp.dot(a_s, v_s, preferred_element_type=f32)           # (L, 2D)
    tgt_n = inst_norm(tgt + tgt2)

    # ---- cross-attention: fused q/k projection, attention map reused for ---
    # ---- both value sets (pos and mem*pos) stacked along N (128 lanes)  ----
    qk = project_norm(jnp.concatenate([tgt_n, mem], axis=0), w_cross)
    a_c = attn_maps(qk[:L], qk[L:], Lm)                            # (L, 2Lm)

    mp = mem * pos
    v_c = jnp.concatenate(
        [jnp.concatenate([pos, mp], axis=-1),                      # (Lm, 4D)
         jnp.concatenate([rot(pos), rot(mp)], axis=-1)], axis=0)   # (2Lm, 4D)
    o = jnp.dot(a_c, v_c, preferred_element_type=f32)              # (L, 4D)
    mask = o[:, :2 * D]                            # cross-attn value = pos
    t3 = o[:, 2 * D:]                              # cross-attn value = mem*pos

    t2 = inst_norm(tgt_n * mask)                   # multiplicative mask branch
    t4 = inst_norm(tgt_n + t3)                     # additive branch
    out_ref[0] = inst_norm(t2 + t4).astype(out_ref.dtype)


# ----------------------------------------------------------------------------
# Layout helpers (ONLY for callers still holding (L, B, D) real/imag pairs;
# the fast path keeps everything in the packed (B, L, 2D) layout).
# ----------------------------------------------------------------------------
def pack_seq(xr, xi):
    # (L, B, D) real/imag -> (B, L, 2D) packed, one VMEM tile per batch elem.
    return jnp.transpose(jnp.concatenate([xr, xi], axis=-1), (1, 0, 2))


def unpack_seq(x):
    # (B, L, 2D) packed -> (L, B, D) real, (L, B, D) imag
    d = x.shape[-1] // 2
    x = jnp.transpose(x, (1, 0, 2))
    return x[..., :d], x[..., d:]


def _combine_complex_weight(wr, wi):
    # (D, Dk) r/i -> (2D, 2Dk) so that
    #   [xr | xi] @ W = [xr@Wr - xi@Wi | xr@Wi + xi@Wr]
    top = jnp.concatenate([wr, wi], axis=1)
    bot = jnp.concatenate([-wi, wr], axis=1)
    return jnp.concatenate([top, bot], axis=0)


def make_decoder_layer(params, input_shape):
    """Build forward_packed(tgt, mem, pos) operating on (B, L, 2D) packed
    tensors (caller keeps activations in this layout across layers)."""
    num_imgs, batch, dim, h, w = input_shape
    hw = h * w
    D = dim
    Dk = params["self_wk_r"].shape[1]
    norm_scale = float(params["norm_scale"])

    # combined complex weights are built once (parameters, not activations)
    w_self = _combine_complex_weight(params["self_wk_r"], params["self_wk_i"])
    w_cross = _combine_complex_weight(params["cross_wk_r"], params["cross_wk_i"])

    kern = functools.partial(
        _fused_decoder_kernel, D=D, Dk=Dk, num_imgs=num_imgs, hw=hw,
        norm_scale=norm_scale, norm_eps=1e-5, temp=30.0)

    @jax.jit
    def forward_packed(tgt, mem, pos):
        B, L, F = tgt.shape
        Lm = mem.shape[1]
        return pl.pallas_call(
            kern,
            grid=(B,),
            in_specs=[
                pl.BlockSpec((1, L, F), lambda b: (b, 0, 0)),
                pl.BlockSpec((1, Lm, F), lambda b: (b, 0, 0)),
                pl.BlockSpec((1, Lm, F), lambda b: (b, 0, 0)),
                pl.BlockSpec((2 * D, 2 * Dk), lambda b: (0, 0)),
                pl.BlockSpec((2 * D, 2 * Dk), lambda b: (0, 0)),
            ],
            out_specs=pl.BlockSpec((1, L, F), lambda b: (b, 0, 0)),
            out_shape=jax.ShapeDtypeStruct((B, L, F), tgt.dtype),
            compiler_params=pltpu.CompilerParams(
                dimension_semantics=("parallel",)),
        )(tgt, mem, pos, w_self, w_cross)

    return forward_packed


# ----------------------------------------------------------------------------
# Pure-JAX reference (same math, no Pallas) for verification
# ----------------------------------------------------------------------------
def _ref_attention(qr, qi, kr, ki, vr, vi, wr, wi):
    def proj(xr, xi):
        pr = jnp.einsum("lbd,dk->lbk", xr, wr) - jnp.einsum("lbd,dk->lbk", xi, wi)
        pi = jnp.einsum("lbd,dk->lbk", xr, wi) + jnp.einsum("lbd,dk->lbk", xi, wr)
        return pr, pi

    pqr, pqi = proj(qr, qi)
    pkr, pki = proj(kr, ki)
    qn = lax.rsqrt(jnp.sum(pqr**2 + pqi**2, -1, keepdims=True) + 1e-12)
    kn = lax.rsqrt(jnp.sum(pkr**2 + pki**2, -1, keepdims=True) + 1e-12)
    pqr, pqi, pkr, pki = pqr * qn, pqi * qn, pkr * kn, pki * kn
    dr = jnp.einsum("qbk,sbk->bqs", pqr, pkr) - jnp.einsum("qbk,sbk->bqs", pqi, pki)
    di = jnp.einsum("qbk,sbk->bqs", pqr, pki) + jnp.einsum("qbk,sbk->bqs", pqi, pkr)
    ar = jax.nn.softmax(dr * 30.0, axis=-1)
    ai = jax.nn.softmax(di * 30.0, axis=-1)
    our = jnp.einsum("bqs,sbd->qbd", ar, vr) - jnp.einsum("bqs,sbd->qbd", ai, vi)
    oui = jnp.einsum("bqs,sbd->qbd", ar, vi) + jnp.einsum("bqs,sbd->qbd", ai, vr)
    return our, oui


def _ref_instance_norm(src, input_shape, scale, eps=1e-5):
    num_imgs, batch, dim, h, w = input_shape
    x = src.reshape(num_imgs, h * w, batch, dim)
    ss = jnp.sum(x * x, axis=(1, 3), keepdims=True)
    factor = scale * jnp.sqrt((dim * h * w) / (ss + eps))
    return (x * factor).reshape(src.shape)


def _ref_decoder_forward(tgt_r, tgt_i, mem_r, mem_i, input_shape,
                         pos_r, pos_i, params):
    scale = params["norm_scale"]
    norm = lambda x: _ref_instance_norm(x, input_shape, scale)
    swr, swi = params["self_wk_r"], params["self_wk_i"]
    cwr, cwi = params["cross_wk_r"], params["cross_wk_i"]

    t2r, t2i = _ref_attention(tgt_r, tgt_i, tgt_r, tgt_i, tgt_r, tgt_i, swr, swi)
    tgt_r = norm(tgt_r + t2r)
    tgt_i = norm(tgt_i + t2i)

    mr, mi = _ref_attention(tgt_r, tgt_i, mem_r, mem_i, pos_r, pos_i, cwr, cwi)
    t2r = norm(tgt_r * mr)
    t2i = norm(tgt_i * mi)

    t3r, t3i = _ref_attention(tgt_r, tgt_i, mem_r, mem_i,
                              mem_r * pos_r, mem_i * pos_i, cwr, cwi)
    t4r = norm(tgt_r + t3r)
    t4i = norm(tgt_i + t3i)

    return norm(t2r + t4r), norm(t2i + t4i)


# ----------------------------------------------------------------------------
if __name__ == "__main__":
    d_model = 32
    key_dim = 128
    num_imgs, batch, h, w = 2, 2, 4, 4
    L = num_imgs * h * w                      # target sequence length = 32
    Lm = 16                                   # memory sequence length
    input_shape = (num_imgs, batch, d_model, h, w)

    key = jax.random.PRNGKey(0)
    ks = jax.random.split(key, 10)
    f32 = jnp.float32

    tgt_r = jax.random.normal(ks[0], (L, batch, d_model), f32)
    tgt_i = jax.random.normal(ks[1], (L, batch, d_model), f32)
    mem_r = jax.random.normal(ks[2], (Lm, batch, d_model), f32)
    mem_i = jax.random.normal(ks[3], (Lm, batch, d_model), f32)
    pos_r = jax.random.normal(ks[4], (Lm, batch, d_model), f32)
    pos_i = jax.random.normal(ks[5], (Lm, batch, d_model), f32)

    # deterministic parameter init (matches nn.Linear.normal_(0, sqrt(2/out)))
    w_std = math.sqrt(2.0 / key_dim)
    params = {
        "self_wk_r":  jax.random.normal(ks[6], (d_model, key_dim), f32) * w_std,
        "self_wk_i":  jax.random.normal(ks[7], (d_model, key_dim), f32) * w_std,
        "cross_wk_r": jax.random.normal(ks[8], (d_model, key_dim), f32) * w_std,
        "cross_wk_i": jax.random.normal(ks[9], (d_model, key_dim), f32) * w_std,
        "norm_scale": math.sqrt(1.0 / (d_model * 4 * 4)),
    }

    forward_packed = make_decoder_layer(params, input_shape)

    # One-time layout conversion at the boundary (in a multi-layer stack the
    # packed (B, L, 2D) tensors stay resident across layers).
    tgt_p = pack_seq(tgt_r, tgt_i)            # (B, L,  2D)
    mem_p = pack_seq(mem_r, mem_i)            # (B, Lm, 2D)
    pos_p = pack_seq(pos_r, pos_i)            # (B, Lm, 2D)

    out_p = forward_packed(tgt_p, mem_p, pos_p)
    jax.block_until_ready(out_p)
    out_r, out_i = unpack_seq(out_p)

    ref_r, ref_i = _ref_decoder_forward(tgt_r, tgt_i, mem_r, mem_i, input_shape,
                                        pos_r, pos_i, params)
    assert out_r.shape == (L, batch, d_model)
    assert out_i.shape == (L, batch, d_model)
    assert jnp.allclose(out_r, ref_r, rtol=1e-3, atol=1e-3), \
        float(jnp.max(jnp.abs(out_r - ref_r)))
    assert jnp.allclose(out_i, ref_i, rtol=1e-3, atol=1e-3), \
        float(jnp.max(jnp.abs(out_i - ref_i)))

    print("KERNEL_OK")
</pallas_src>

<mosaic_0001>
module attributes {stable_mosaic.version = 11 : i64} {
  func.func @_fused_decoder_kernel(%arg0: i32, %arg1: memref<1x32x64xf32, #tpu.memory_space<vmem>>, %arg2: memref<1x16x64xf32, #tpu.memory_space<vmem>>, %arg3: memref<1x16x64xf32, #tpu.memory_space<vmem>>, %arg4: memref<64x256xf32, #tpu.memory_space<vmem>>, %arg5: memref<64x256xf32, #tpu.memory_space<vmem>>, %arg6: memref<1x32x64xf32, #tpu.memory_space<vmem>>) attributes {dimension_semantics = [#tpu.dimension_semantics<parallel>], iteration_bounds = array<i64: 2>, scalar_prefetch = 0 : i64, scratch_operands = 0 : i64, tpu.core_type = #tpu.core_type<tc>, window_params = [{transform_indices = @transform_0, window_bounds = array<i64: 1, 32, 64>}, {transform_indices = @transform_1, window_bounds = array<i64: 1, 16, 64>}, {transform_indices = @transform_2, window_bounds = array<i64: 1, 16, 64>}, {pipeline_mode = #tpu.pipeline_mode<synchronous>, transform_indices = @transform_3, window_bounds = array<i64: 64, 256>}, {pipeline_mode = #tpu.pipeline_mode<synchronous>, transform_indices = @transform_4, window_bounds = array<i64: 64, 256>}, {transform_indices = @transform_5, window_bounds = array<i64: 1, 32, 64>}]} {
    %c0 = arith.constant 0 : index
    %c0_0 = arith.constant 0 : index
    %c0_1 = arith.constant 0 : index
    %0 = vector.load %arg1[%c0, %c0_0, %c0_1] : memref<1x32x64xf32, #tpu.memory_space<vmem>>, vector<1x32x64xf32>
    %1 = vector.shape_cast %0 : vector<1x32x64xf32> to vector<32x64xf32>
    %c0_2 = arith.constant 0 : index
    %c0_3 = arith.constant 0 : index
    %c0_4 = arith.constant 0 : index
    %2 = vector.load %arg2[%c0_2, %c0_3, %c0_4] : memref<1x16x64xf32, #tpu.memory_space<vmem>>, vector<1x16x64xf32>
    %3 = vector.shape_cast %2 : vector<1x16x64xf32> to vector<16x64xf32>
    %c0_5 = arith.constant 0 : index
    %c0_6 = arith.constant 0 : index
    %c0_7 = arith.constant 0 : index
    %4 = vector.load %arg3[%c0_5, %c0_6, %c0_7] : memref<1x16x64xf32, #tpu.memory_space<vmem>>, vector<1x16x64xf32>
    %5 = vector.shape_cast %4 : vector<1x16x64xf32> to vector<16x64xf32>
    %c0_8 = arith.constant 0 : index
    %c0_9 = arith.constant 0 : index
    %6 = vector.load %arg4[%c0_8, %c0_9] : memref<64x256xf32, #tpu.memory_space<vmem>>, vector<64x256xf32>
    %c0_10 = arith.constant 0 : index
    %c0_11 = arith.constant 0 : index
    %7 = vector.load %arg5[%c0_10, %c0_11] : memref<64x256xf32, #tpu.memory_space<vmem>>, vector<64x256xf32>
    %8 = tpu.iota {dimensions = array<i32: 1>} : vector<1x256xi32>
    %c128_i32 = arith.constant 128 : i32
    %9 = vector.broadcast %c128_i32 : i32 to vector<1x256xi32>
    %10 = arith.cmpi slt, %8, %9 : vector<1x256xi32>
    %cst = arith.constant 1.000000e+00 : f32
    %cst_12 = arith.constant -1.000000e+00 : f32
    %11 = vector.broadcast %cst : f32 to vector<1x256xf32>
    %12 = vector.broadcast %cst_12 : f32 to vector<1x256xf32>
    %13 = arith.select %10, %11, %12 : vector<1x256xi1>, vector<1x256xf32>
    %14 = tpu.iota {dimensions = array<i32: 2>} : vector<1x1x64xi32>
    %c32_i32 = arith.constant 32 : i32
    %15 = vector.broadcast %c32_i32 : i32 to vector<1x1x64xi32>
    %16 = arith.cmpi slt, %14, %15 : vector<1x1x64xi32>
    %cst_13 = arith.constant dense<0.000000e+00> : vector<32x256xf32>
    %17 = tpu.matmul %1, %6, %cst_13 {dimension_numbers = #tpu.dot_dimension_numbers<[1], [0], [0], [1], [0, 0, 1, 1], [], []>} : vector<32x64xf32>, vector<64x256xf32>, vector<32x256xf32> -> vector<32x256xf32>
    %18 = arith.mulf %17, %17 : vector<32x256xf32>
    %cst_14 = arith.constant dense<0.000000e+00> : vector<32xf32>
    %19 = vector.multi_reduction <add>, %18, %cst_14 [1] : vector<32x256xf32> to vector<32xf32>
    %20 = vector.shape_cast %19 : vector<32xf32> to vector<32x1xf32>
    %cst_15 = arith.constant 9.99999996E-13 : f32
    %21 = vector.broadcast %cst_15 : f32 to vector<32x1xf32>
    %22 = arith.addf %20, %21 : vector<32x1xf32>
    %23 = math.rsqrt %22 : vector<32x1xf32>
    %24 = vector.broadcast %23 : vector<32x1xf32> to vector<32x256xf32>
    %25 = arith.mulf %17, %24 : vector<32x256xf32>
    %26 = vector.broadcast %13 : vector<1x256xf32> to vector<32x256xf32>
    %27 = arith.mulf %25, %26 : vector<32x256xf32>
    %28 = vector.extract_strided_slice %25 {offsets = [0, 128], sizes = [32, 128], strides = [1, 1]} : vector<32x256xf32> to vector<32x128xf32>
    %29 = vector.extract_strided_slice %25 {offsets = [0, 0], sizes = [32, 128], strides = [1, 1]} : vector<32x256xf32> to vector<32x128xf32>
    %30 = tpu.concatenate %28, %29 in 1 : vector<32x128xf32>, vector<32x128xf32> -> vector<32x256xf32>
    %31 = tpu.concatenate %27, %30 in 0 : vector<32x256xf32>, vector<32x256xf32> -> vector<64x256xf32>
    %cst_16 = arith.constant dense<0.000000e+00> : vector<32x64xf32>
    %32 = tpu.matmul %25, %31, %cst_16 {dimension_numbers = #tpu.dot_dimension_numbers<[1], [1], [0], [0], [0, 0, 1, 0], [], []>} : vector<32x256xf32>, vector<64x256xf32>, vector<32x64xf32> -> vector<32x64xf32>
    %cst_17 = arith.constant 3.000000e+01 : f32
    %33 = vector.broadcast %cst_17 : f32 to vector<32x64xf32>
    %34 = arith.mulf %32, %33 : vector<32x64xf32>
    %35 = tpu.iota {dimensions = array<i32: 1>} : vector<32x64xi32>
    %c32_i32_18 = arith.constant 32 : i32
    %36 = vector.broadcast %c32_i32_18 : i32 to vector<32x64xi32>
    %37 = arith.cmpi slt, %35, %36 : vector<32x64xi32>
    %cst_19 = arith.constant 0xFF800000 : f32
    %38 = vector.broadcast %cst_19 : f32 to vector<32x64xf32>
    %39 = arith.select %37, %34, %38 : vector<32x64xi1>, vector<32x64xf32>
    %cst_20 = arith.constant dense<0xFF800000> : vector<32xf32>
    %40 = vector.multi_reduction <maximumf>, %39, %cst_20 [1] : vector<32x64xf32> to vector<32xf32>
    %41 = vector.shape_cast %40 : vector<32xf32> to vector<32x1xf32>
    %cst_21 = arith.constant 0xFF800000 : f32
    %42 = vector.broadcast %cst_21 : f32 to vector<32x64xf32>
    %43 = arith.select %37, %42, %34 : vector<32x64xi1>, vector<32x64xf32>
    %cst_22 = arith.constant dense<0xFF800000> : vector<32xf32>
    %44 = vector.multi_reduction <maximumf>, %43, %cst_22 [1] : vector<32x64xf32> to vector<32xf32>
    %45 = vector.shape_cast %44 : vector<32xf32> to vector<32x1xf32>
    %46 = vector.shape_cast %41 : vector<32x1xf32> to vector<32x1xf32>
    %47 = vector.broadcast %46 : vector<32x1xf32> to vector<32x64xf32>
    %48 = vector.shape_cast %45 : vector<32x1xf32> to vector<32x1xf32>
    %49 = vector.broadcast %48 : vector<32x1xf32> to vector<32x64xf32>
    %50 = arith.select %37, %47, %49 : vector<32x64xi1>, vector<32x64xf32>
    %51 = arith.subf %34, %50 : vector<32x64xf32>
    %52 = math.exp %51 : vector<32x64xf32>
    %cst_23 = arith.constant 0.000000e+00 : f32
    %53 = vector.broadcast %cst_23 : f32 to vector<32x64xf32>
    %54 = arith.select %37, %52, %53 : vector<32x64xi1>, vector<32x64xf32>
    %cst_24 = arith.constant dense<0.000000e+00> : vector<32xf32>
    %55 = vector.multi_reduction <add>, %54, %cst_24 [1] : vector<32x64xf32> to vector<32xf32>
    %56 = vector.shape_cast %55 : vector<32xf32> to vector<32x1xf32>
    %cst_25 = arith.constant 0.000000e+00 : f32
    %57 = vector.broadcast %cst_25 : f32 to vector<32x64xf32>
    %58 = arith.select %37, %57, %52 : vector<32x64xi1>, vector<32x64xf32>
    %cst_26 = arith.constant dense<0.000000e+00> : vector<32xf32>
    %59 = vector.multi_reduction <add>, %58, %cst_26 [1] : vector<32x64xf32> to vector<32xf32>
    %60 = vector.shape_cast %59 : vector<32xf32> to vector<32x1xf32>
    %61 = vector.shape_cast %56 : vector<32x1xf32> to vector<32x1xf32>
    %62 = vector.broadcast %61 : vector<32x1xf32> to vector<32x64xf32>
    %63 = vector.shape_cast %60 : vector<32x1xf32> to vector<32x1xf32>
    %64 = vector.broadcast %63 : vector<32x1xf32> to vector<32x64xf32>
    %65 = arith.select %37, %62, %64 : vector<32x64xi1>, vector<32x64xf32>
    %66 = arith.divf %52, %65 : vector<32x64xf32>
    %67 = vector.extract_strided_slice %1 {offsets = [0, 32], sizes = [32, 32], strides = [1, 1]} : vector<32x64xf32> to vector<32x32xf32>
    %cst_27 = arith.constant 0.000000e+00 : f32
    %68 = vector.broadcast %cst_27 : f32 to vector<32x32xf32>
    %69 = arith.subf %68, %67 : vector<32x32xf32>
    %70 = vector.extract_strided_slice %1 {offsets = [0, 0], sizes = [32, 32], strides = [1, 1]} : vector<32x64xf32> to vector<32x32xf32>
    %71 = tpu.concatenate %69, %70 in 1 : vector<32x32xf32>, vector<32x32xf32> -> vector<32x64xf32>
    %72 = tpu.concatenate %1, %71 in 0 : vector<32x64xf32>, vector<32x64xf32> -> vector<64x64xf32>
    %cst_28 = arith.constant dense<0.000000e+00> : vector<32x64xf32>
    %73 = tpu.matmul %66, %72, %cst_28 {dimension_numbers = #tpu.dot_dimension_numbers<[1], [0], [0], [1], [0, 0, 1, 1], [], []>} : vector<32x64xf32>, vector<64x64xf32>, vector<32x64xf32> -> vector<32x64xf32>
    %74 = arith.addf %1, %73 : vector<32x64xf32>
    %75 = vector.shape_cast %74 : vector<32x64xf32> to vector<2x16x64xf32>
    %76 = arith.mulf %75, %75 : vector<2x16x64xf32>
    %cst_29 = arith.constant dense<0.000000e+00> : vector<2x64xf32>
    %77 = vector.multi_reduction <add>, %76, %cst_29 [1] : vector<2x16x64xf32> to vector<2x64xf32>
    %78 = vector.shape_cast %77 : vector<2x64xf32> to vector<2x1x64xf32>
    %cst_30 = arith.constant 0.000000e+00 : f32
    %79 = vector.shape_cast %16 : vector<1x1x64xi1> to vector<1x1x64xi1>
    %80 = vector.broadcast %79 : vector<1x1x64xi1> to vector<2x1x64xi1>
    %81 = vector.broadcast %cst_30 : f32 to vector<2x1x64xf32>
    %82 = arith.select %80, %78, %81 : vector<2x1x64xi1>, vector<2x1x64xf32>
    %cst_31 = arith.constant dense<0.000000e+00> : vector<2x1xf32>
    %83 = vector.multi_reduction <add>, %82, %cst_31 [2] : vector<2x1x64xf32> to vector<2x1xf32>
    %84 = vector.shape_cast %83 : vector<2x1xf32> to vector<2x1x1xf32>
    %cst_32 = arith.constant 0.000000e+00 : f32
    %85 = vector.shape_cast %16 : vector<1x1x64xi1> to vector<1x1x64xi1>
    %86 = vector.broadcast %85 : vector<1x1x64xi1> to vector<2x1x64xi1>
    %87 = vector.broadcast %cst_32 : f32 to vector<2x1x64xf32>
    %88 = arith.select %86, %87, %78 : vector<2x1x64xi1>, vector<2x1x64xf32>
    %cst_33 = arith.constant dense<0.000000e+00> : vector<2x1xf32>
    %89 = vector.multi_reduction <add>, %88, %cst_33 [2] : vector<2x1x64xf32> to vector<2x1xf32>
    %90 = vector.shape_cast %89 : vector<2x1xf32> to vector<2x1x1xf32>
    %91 = vector.shape_cast %16 : vector<1x1x64xi1> to vector<1x1x64xi1>
    %92 = vector.broadcast %91 : vector<1x1x64xi1> to vector<2x1x64xi1>
    %93 = vector.shape_cast %84 : vector<2x1x1xf32> to vector<2x1x1xf32>
    %94 = vector.broadcast %93 : vector<2x1x1xf32> to vector<2x1x64xf32>
    %95 = vector.shape_cast %90 : vector<2x1x1xf32> to vector<2x1x1xf32>
    %96 = vector.broadcast %95 : vector<2x1x1xf32> to vector<2x1x64xf32>
    %97 = arith.select %92, %94, %96 : vector<2x1x64xi1>, vector<2x1x64xf32>
    %cst_34 = arith.constant 9.99999974E-6 : f32
    %98 = vector.broadcast %cst_34 : f32 to vector<2x1x64xf32>
    %99 = arith.addf %97, %98 : vector<2x1x64xf32>
    %100 = math.rsqrt %99 : vector<2x1x64xf32>
    %cst_35 = arith.constant 1.000000e+00 : f32
    %101 = vector.broadcast %cst_35 : f32 to vector<2x1x64xf32>
    %102 = arith.mulf %101, %100 : vector<2x1x64xf32>
    %103 = vector.broadcast %102 : vector<2x1x64xf32> to vector<2x16x64xf32>
    %104 = arith.mulf %75, %103 : vector<2x16x64xf32>
    %105 = vector.shape_cast %104 : vector<2x16x64xf32> to vector<32x64xf32>
    %106 = tpu.concatenate %105, %3 in 0 : vector<32x64xf32>, vector<16x64xf32> -> vector<48x64xf32>
    %cst_36 = arith.constant dense<0.000000e+00> : vector<48x256xf32>
    %107 = tpu.matmul %106, %7, %cst_36 {dimension_numbers = #tpu.dot_dimension_numbers<[1], [0], [0], [1], [0, 0, 1, 1], [], []>} : vector<48x64xf32>, vector<64x256xf32>, vector<48x256xf32> -> vector<48x256xf32>
    %108 = arith.mulf %107, %107 : vector<48x256xf32>
    %cst_37 = arith.constant dense<0.000000e+00> : vector<48xf32>
    %109 = vector.multi_reduction <add>, %108, %cst_37 [1] : vector<48x256xf32> to vector<48xf32>
    %110 = vector.shape_cast %109 : vector<48xf32> to vector<48x1xf32>
    %cst_38 = arith.constant 9.99999996E-13 : f32
    %111 = vector.broadcast %cst_38 : f32 to vector<48x1xf32>
    %112 = arith.addf %110, %111 : vector<48x1xf32>
    %113 = math.rsqrt %112 : vector<48x1xf32>
    %114 = vector.broadcast %113 : vector<48x1xf32> to vector<48x256xf32>
    %115 = arith.mulf %107, %114 : vector<48x256xf32>
    %116 = vector.extract_strided_slice %115 {offsets = [0, 0], sizes = [32, 256], strides = [1, 1]} : vector<48x256xf32> to vector<32x256xf32>
    %117 = vector.extract_strided_slice %115 {offsets = [32, 0], sizes = [16, 256], strides = [1, 1]} : vector<48x256xf32> to vector<16x256xf32>
    %118 = vector.broadcast %13 : vector<1x256xf32> to vector<16x256xf32>
    %119 = arith.mulf %117, %118 : vector<16x256xf32>
    %120 = vector.extract_strided_slice %117 {offsets = [0, 128], sizes = [16, 128], strides = [1, 1]} : vector<16x256xf32> to vector<16x128xf32>
    %121 = vector.extract_strided_slice %117 {offsets = [0, 0], sizes = [16, 128], strides = [1, 1]} : vector<16x256xf32> to vector<16x128xf32>
    %122 = tpu.concatenate %120, %121 in 1 : vector<16x128xf32>, vector<16x128xf32> -> vector<16x256xf32>
    %123 = tpu.concatenate %119, %122 in 0 : vector<16x256xf32>, vector<16x256xf32> -> vector<32x256xf32>
    %cst_39 = arith.constant dense<0.000000e+00> : vector<32x32xf32>
    %124 = tpu.matmul %116, %123, %cst_39 {dimension_numbers = #tpu.dot_dimension_numbers<[1], [1], [0], [0], [0, 0, 1, 0], [], []>} : vector<32x256xf32>, vector<32x256xf32>, vector<32x32xf32> -> vector<32x32xf32>
    %cst_40 = arith.constant 3.000000e+01 : f32
    %125 = vector.broadcast %cst_40 : f32 to vector<32x32xf32>
    %126 = arith.mulf %124, %125 : vector<32x32xf32>
    %127 = tpu.iota {dimensions = array<i32: 1>} : vector<32x32xi32>
    %c16_i32 = arith.constant 16 : i32
    %128 = vector.broadcast %c16_i32 : i32 to vector<32x32xi32>
    %129 = arith.cmpi slt, %127, %128 : vector<32x32xi32>
    %cst_41 = arith.constant 0xFF800000 : f32
    %130 = vector.broadcast %cst_41 : f32 to vector<32x32xf32>
    %131 = arith.select %129, %126, %130 : vector<32x32xi1>, vector<32x32xf32>
    %cst_42 = arith.constant dense<0xFF800000> : vector<32xf32>
    %132 = vector.multi_reduction <maximumf>, %131, %cst_42 [1] : vector<32x32xf32> to vector<32xf32>
    %133 = vector.shape_cast %132 : vector<32xf32> to vector<32x1xf32>
    %cst_43 = arith.constant 0xFF800000 : f32
    %134 = vector.broadcast %cst_43 : f32 to vector<32x32xf32>
    %135 = arith.select %129, %134, %126 : vector<32x32xi1>, vector<32x32xf32>
    %cst_44 = arith.constant dense<0xFF800000> : vector<32xf32>
    %136 = vector.multi_reduction <maximumf>, %135, %cst_44 [1] : vector<32x32xf32> to vector<32xf32>
    %137 = vector.shape_cast %136 : vector<32xf32> to vector<32x1xf32>
    %138 = vector.shape_cast %133 : vector<32x1xf32> to vector<32x1xf32>
    %139 = vector.broadcast %138 : vector<32x1xf32> to vector<32x32xf32>
    %140 = vector.shape_cast %137 : vector<32x1xf32> to vector<32x1xf32>
    %141 = vector.broadcast %140 : vector<32x1xf32> to vector<32x32xf32>
    %142 = arith.select %129, %139, %141 : vector<32x32xi1>, vector<32x32xf32>
    %143 = arith.subf %126, %142 : vector<32x32xf32>
    %144 = math.exp %143 : vector<32x32xf32>
    %cst_45 = arith.constant 0.000000e+00 : f32
    %145 = vector.broadcast %cst_45 : f32 to vector<32x32xf32>
    %146 = arith.select %129, %144, %145 : vector<32x32xi1>, vector<32x32xf32>
    %cst_46 = arith.constant dense<0.000000e+00> : vector<32xf32>
    %147 = vector.multi_reduction <add>, %146, %cst_46 [1] : vector<32x32xf32> to vector<32xf32>
    %148 = vector.shape_cast %147 : vector<32xf32> to vector<32x1xf32>
    %cst_47 = arith.constant 0.000000e+00 : f32
    %149 = vector.broadcast %cst_47 : f32 to vector<32x32xf32>
    %150 = arith.select %129, %149, %144 : vector<32x32xi1>, vector<32x32xf32>
    %cst_48 = arith.constant dense<0.000000e+00> : vector<32xf32>
    %151 = vector.multi_reduction <add>, %150, %cst_48 [1] : vector<32x32xf32> to vector<32xf32>
    %152 = vector.shape_cast %151 : vector<32xf32> to vector<32x1xf32>
    %153 = vector.shape_cast %148 : vector<32x1xf32> to vector<32x1xf32>
    %154 = vector.broadcast %153 : vector<32x1xf32> to vector<32x32xf32>
    %155 = vector.shape_cast %152 : vector<32x1xf32> to vector<32x1xf32>
    %156 = vector.broadcast %155 : vector<32x1xf32> to vector<32x32xf32>
    %157 = arith.select %129, %154, %156 : vector<32x32xi1>, vector<32x32xf32>
    %158 = arith.divf %144, %157 : vector<32x32xf32>
    %159 = arith.mulf %3, %5 : vector<16x64xf32>
    %160 = tpu.concatenate %5, %159 in 1 : vector<16x64xf32>, vector<16x64xf32> -> vector<16x128xf32>
    %161 = vector.extract_strided_slice %5 {offsets = [0, 32], sizes = [16, 32], strides = [1, 1]} : vector<16x64xf32> to vector<16x32xf32>
    %cst_49 = arith.constant 0.000000e+00 : f32
    %162 = vector.broadcast %cst_49 : f32 to vector<16x32xf32>
    %163 = arith.subf %162, %161 : vector<16x32xf32>
    %164 = vector.extract_strided_slice %5 {offsets = [0, 0], sizes = [16, 32], strides = [1, 1]} : vector<16x64xf32> to vector<16x32xf32>
    %165 = tpu.concatenate %163, %164 in 1 : vector<16x32xf32>, vector<16x32xf32> -> vector<16x64xf32>
    %166 = vector.extract_strided_slice %159 {offsets = [0, 32], sizes = [16, 32], strides = [1, 1]} : vector<16x64xf32> to vector<16x32xf32>
    %cst_50 = arith.constant 0.000000e+00 : f32
    %167 = vector.broadcast %cst_50 : f32 to vector<16x32xf32>
    %168 = arith.subf %167, %166 : vector<16x32xf32>
    %169 = vector.extract_strided_slice %159 {offsets = [0, 0], sizes = [16, 32], strides = [1, 1]} : vector<16x64xf32> to vector<16x32xf32>
    %170 = tpu.concatenate %168, %169 in 1 : vector<16x32xf32>, vector<16x32xf32> -> vector<16x64xf32>
    %171 = tpu.concatenate %165, %170 in 1 : vector<16x64xf32>, vector<16x64xf32> -> vector<16x128xf32>
    %172 = tpu.concatenate %160, %171 in 0 : vector<16x128xf32>, vector<16x128xf32> -> vector<32x128xf32>
    %cst_51 = arith.constant dense<0.000000e+00> : vector<32x128xf32>
    %173 = tpu.matmul %158, %172, %cst_51 {dimension_numbers = #tpu.dot_dimension_numbers<[1], [0], [0], [1], [0, 0, 1, 1], [], []>} : vector<32x32xf32>, vector<32x128xf32>, vector<32x128xf32> -> vector<32x128xf32>
    %174 = vector.extract_strided_slice %173 {offsets = [0, 0], sizes = [32, 64], strides = [1, 1]} : vector<32x128xf32> to vector<32x64xf32>
    %175 = vector.extract_strided_slice %173 {offsets = [0, 64], sizes = [32, 64], strides = [1, 1]} : vector<32x128xf32> to vector<32x64xf32>
    %176 = arith.mulf %105, %174 : vector<32x64xf32>
    %177 = vector.shape_cast %176 : vector<32x64xf32> to vector<2x16x64xf32>
    %178 = arith.mulf %177, %177 : vector<2x16x64xf32>
    %cst_52 = arith.constant dense<0.000000e+00> : vector<2x64xf32>
    %179 = vector.multi_reduction <add>, %178, %cst_52 [1] : vector<2x16x64xf32> to vector<2x64xf32>
    %180 = vector.shape_cast %179 : vector<2x64xf32> to vector<2x1x64xf32>
    %cst_53 = arith.constant 0.000000e+00 : f32
    %181 = vector.shape_cast %16 : vector<1x1x64xi1> to vector<1x1x64xi1>
    %182 = vector.broadcast %181 : vector<1x1x64xi1> to vector<2x1x64xi1>
    %183 = vector.broadcast %cst_53 : f32 to vector<2x1x64xf32>
    %184 = arith.select %182, %180, %183 : vector<2x1x64xi1>, vector<2x1x64xf32>
    %cst_54 = arith.constant dense<0.000000e+00> : vector<2x1xf32>
    %185 = vector.multi_reduction <add>, %184, %cst_54 [2] : vector<2x1x64xf32> to vector<2x1xf32>
    %186 = vector.shape_cast %185 : vector<2x1xf32> to vector<2x1x1xf32>
    %cst_55 = arith.constant 0.000000e+00 : f32
    %187 = vector.shape_cast %16 : vector<1x1x64xi1> to vector<1x1x64xi1>
    %188 = vector.broadcast %187 : vector<1x1x64xi1> to vector<2x1x64xi1>
    %189 = vector.broadcast %cst_55 : f32 to vector<2x1x64xf32>
    %190 = arith.select %188, %189, %180 : vector<2x1x64xi1>, vector<2x1x64xf32>
    %cst_56 = arith.constant dense<0.000000e+00> : vector<2x1xf32>
    %191 = vector.multi_reduction <add>, %190, %cst_56 [2] : vector<2x1x64xf32> to vector<2x1xf32>
    %192 = vector.shape_cast %191 : vector<2x1xf32> to vector<2x1x1xf32>
    %193 = vector.shape_cast %16 : vector<1x1x64xi1> to vector<1x1x64xi1>
    %194 = vector.broadcast %193 : vector<1x1x64xi1> to vector<2x1x64xi1>
    %195 = vector.shape_cast %186 : vector<2x1x1xf32> to vector<2x1x1xf32>
    %196 = vector.broadcast %195 : vector<2x1x1xf32> to vector<2x1x64xf32>
    %197 = vector.shape_cast %192 : vector<2x1x1xf32> to vector<2x1x1xf32>
    %198 = vector.broadcast %197 : vector<2x1x1xf32> to vector<2x1x64xf32>
    %199 = arith.select %194, %196, %198 : vector<2x1x64xi1>, vector<2x1x64xf32>
    %cst_57 = arith.constant 9.99999974E-6 : f32
    %200 = vector.broadcast %cst_57 : f32 to vector<2x1x64xf32>
    %201 = arith.addf %199, %200 : vector<2x1x64xf32>
    %202 = math.rsqrt %201 : vector<2x1x64xf32>
    %cst_58 = arith.constant 1.000000e+00 : f32
    %203 = vector.broadcast %cst_58 : f32 to vector<2x1x64xf32>
    %204 = arith.mulf %203, %202 : vector<2x1x64xf32>
    %205 = vector.broadcast %204 : vector<2x1x64xf32> to vector<2x16x64xf32>
    %206 = arith.mulf %177, %205 : vector<2x16x64xf32>
    %207 = vector.shape_cast %206 : vector<2x16x64xf32> to vector<32x64xf32>
    %208 = arith.addf %105, %175 : vector<32x64xf32>
    %209 = vector.shape_cast %208 : vector<32x64xf32> to vector<2x16x64xf32>
    %210 = arith.mulf %209, %209 : vector<2x16x64xf32>
    %cst_59 = arith.constant dense<0.000000e+00> : vector<2x64xf32>
    %211 = vector.multi_reduction <add>, %210, %cst_59 [1] : vector<2x16x64xf32> to vector<2x64xf32>
    %212 = vector.shape_cast %211 : vector<2x64xf32> to vector<2x1x64xf32>
    %cst_60 = arith.constant 0.000000e+00 : f32
    %213 = vector.shape_cast %16 : vector<1x1x64xi1> to vector<1x1x64xi1>
    %214 = vector.broadcast %213 : vector<1x1x64xi1> to vector<2x1x64xi1>
    %215 = vector.broadcast %cst_60 : f32 to vector<2x1x64xf32>
    %216 = arith.select %214, %212, %215 : vector<2x1x64xi1>, vector<2x1x64xf32>
    %cst_61 = arith.constant dense<0.000000e+00> : vector<2x1xf32>
    %217 = vector.multi_reduction <add>, %216, %cst_61 [2] : vector<2x1x64xf32> to vector<2x1xf32>
    %218 = vector.shape_cast %217 : vector<2x1xf32> to vector<2x1x1xf32>
    %cst_62 = arith.constant 0.000000e+00 : f32
    %219 = vector.shape_cast %16 : vector<1x1x64xi1> to vector<1x1x64xi1>
    %220 = vector.broadcast %219 : vector<1x1x64xi1> to vector<2x1x64xi1>
    %221 = vector.broadcast %cst_62 : f32 to vector<2x1x64xf32>
    %222 = arith.select %220, %221, %212 : vector<2x1x64xi1>, vector<2x1x64xf32>
    %cst_63 = arith.constant dense<0.000000e+00> : vector<2x1xf32>
    %223 = vector.multi_reduction <add>, %222, %cst_63 [2] : vector<2x1x64xf32> to vector<2x1xf32>
    %224 = vector.shape_cast %223 : vector<2x1xf32> to vector<2x1x1xf32>
    %225 = vector.shape_cast %16 : vector<1x1x64xi1> to vector<1x1x64xi1>
    %226 = vector.broadcast %225 : vector<1x1x64xi1> to vector<2x1x64xi1>
    %227 = vector.shape_cast %218 : vector<2x1x1xf32> to vector<2x1x1xf32>
    %228 = vector.broadcast %227 : vector<2x1x1xf32> to vector<2x1x64xf32>
    %229 = vector.shape_cast %224 : vector<2x1x1xf32> to vector<2x1x1xf32>
    %230 = vector.broadcast %229 : vector<2x1x1xf32> to vector<2x1x64xf32>
    %231 = arith.select %226, %228, %230 : vector<2x1x64xi1>, vector<2x1x64xf32>
    %cst_64 = arith.constant 9.99999974E-6 : f32
    %232 = vector.broadcast %cst_64 : f32 to vector<2x1x64xf32>
    %233 = arith.addf %231, %232 : vector<2x1x64xf32>
    %234 = math.rsqrt %233 : vector<2x1x64xf32>
    %cst_65 = arith.constant 1.000000e+00 : f32
    %235 = vector.broadcast %cst_65 : f32 to vector<2x1x64xf32>
    %236 = arith.mulf %235, %234 : vector<2x1x64xf32>
    %237 = vector.broadcast %236 : vector<2x1x64xf32> to vector<2x16x64xf32>
    %238 = arith.mulf %209, %237 : vector<2x16x64xf32>
    %239 = vector.shape_cast %238 : vector<2x16x64xf32> to vector<32x64xf32>
    %240 = arith.addf %207, %239 : vector<32x64xf32>
    %241 = vector.shape_cast %240 : vector<32x64xf32> to vector<2x16x64xf32>
    %242 = arith.mulf %241, %241 : vector<2x16x64xf32>
    %cst_66 = arith.constant dense<0.000000e+00> : vector<2x64xf32>
    %243 = vector.multi_reduction <add>, %242, %cst_66 [1] : vector<2x16x64xf32> to vector<2x64xf32>
    %244 = vector.shape_cast %243 : vector<2x64xf32> to vector<2x1x64xf32>
    %cst_67 = arith.constant 0.000000e+00 : f32
    %245 = vector.shape_cast %16 : vector<1x1x64xi1> to vector<1x1x64xi1>
    %246 = vector.broadcast %245 : vector<1x1x64xi1> to vector<2x1x64xi1>
    %247 = vector.broadcast %cst_67 : f32 to vector<2x1x64xf32>
    %248 = arith.select %246, %244, %247 : vector<2x1x64xi1>, vector<2x1x64xf32>
    %cst_68 = arith.constant dense<0.000000e+00> : vector<2x1xf32>
    %249 = vector.multi_reduction <add>, %248, %cst_68 [2] : vector<2x1x64xf32> to vector<2x1xf32>
    %250 = vector.shape_cast %249 : vector<2x1xf32> to vector<2x1x1xf32>
    %cst_69 = arith.constant 0.000000e+00 : f32
    %251 = vector.shape_cast %16 : vector<1x1x64xi1> to vector<1x1x64xi1>
    %252 = vector.broadcast %251 : vector<1x1x64xi1> to vector<2x1x64xi1>
    %253 = vector.broadcast %cst_69 : f32 to vector<2x1x64xf32>
    %254 = arith.select %252, %253, %244 : vector<2x1x64xi1>, vector<2x1x64xf32>
    %cst_70 = arith.constant dense<0.000000e+00> : vector<2x1xf32>
    %255 = vector.multi_reduction <add>, %254, %cst_70 [2] : vector<2x1x64xf32> to vector<2x1xf32>
    %256 = vector.shape_cast %255 : vector<2x1xf32> to vector<2x1x1xf32>
    %257 = vector.shape_cast %16 : vector<1x1x64xi1> to vector<1x1x64xi1>
    %258 = vector.broadcast %257 : vector<1x1x64xi1> to vector<2x1x64xi1>
    %259 = vector.shape_cast %250 : vector<2x1x1xf32> to vector<2x1x1xf32>
    %260 = vector.broadcast %259 : vector<2x1x1xf32> to vector<2x1x64xf32>
    %261 = vector.shape_cast %256 : vector<2x1x1xf32> to vector<2x1x1xf32>
    %262 = vector.broadcast %261 : vector<2x1x1xf32> to vector<2x1x64xf32>
    %263 = arith.select %258, %260, %262 : vector<2x1x64xi1>, vector<2x1x64xf32>
    %cst_71 = arith.constant 9.99999974E-6 : f32
    %264 = vector.broadcast %cst_71 : f32 to vector<2x1x64xf32>
    %265 = arith.addf %263, %264 : vector<2x1x64xf32>
    %266 = math.rsqrt %265 : vector<2x1x64xf32>
    %cst_72 = arith.constant 1.000000e+00 : f32
    %267 = vector.broadcast %cst_72 : f32 to vector<2x1x64xf32>
    %268 = arith.mulf %267, %266 : vector<2x1x64xf32>
    %269 = vector.broadcast %268 : vector<2x1x64xf32> to vector<2x16x64xf32>
    %270 = arith.mulf %241, %269 : vector<2x16x64xf32>
    %271 = vector.shape_cast %270 : vector<2x16x64xf32> to vector<32x64xf32>
    %c0_73 = arith.constant 0 : index
    %c0_74 = arith.constant 0 : index
    %c0_75 = arith.constant 0 : index
    %272 = vector.load %arg6[%c0_73, %c0_74, %c0_75] : memref<1x32x64xf32, #tpu.memory_space<vmem>>, vector<1x32x64xf32>
    %273 = vector.shape_cast %272 : vector<1x32x64xf32> to vector<32x64xf32>
    %274 = vector.shape_cast %271 : vector<32x64xf32> to vector<1x32x64xf32>
    tpu.vector_store %arg6[%c0_73, %c0_74, %c0_75], %274 {strides = array<i32>} : memref<1x32x64xf32, #tpu.memory_space<vmem>>, vector<1x32x64xf32>,
    return
  }
  func.func @transform_0(%arg0: i32) -> (i32, i32, i32) {
    %c0_i32 = arith.constant 0 : i32
    %c0_i32_0 = arith.constant 0 : i32
    %c0_i32_1 = arith.constant 0 : i32
    return %arg0, %c0_i32, %c0_i32_0 : i32, i32, i32
  }
  func.func @transform_1(%arg0: i32) -> (i32, i32, i32) {
    %c0_i32 = arith.constant 0 : i32
    %c0_i32_0 = arith.constant 0 : i32
    %c0_i32_1 = arith.constant 0 : i32
    return %arg0, %c0_i32, %c0_i32_0 : i32, i32, i32
  }
  func.func @transform_2(%arg0: i32) -> (i32, i32, i32) {
    %c0_i32 = arith.constant 0 : i32
    %c0_i32_0 = arith.constant 0 : i32
    %c0_i32_1 = arith.constant 0 : i32
    return %arg0, %c0_i32, %c0_i32_0 : i32, i32, i32
  }
  func.func @transform_3(%arg0: i32) -> (i32, i32) {
    %c0_i32 = arith.constant 0 : i32
    %c0_i32_0 = arith.constant 0 : i32
    %c0_i32_1 = arith.constant 0 : i32
    return %c0_i32, %c0_i32_0 : i32, i32
  }
  func.func @transform_4(%arg0: i32) -> (i32, i32) {
    %c0_i32 = arith.constant 0 : i32
    %c0_i32_0 = arith.constant 0 : i32
    %c0_i32_1 = arith.constant 0 : i32
    return %c0_i32, %c0_i32_0 : i32, i32
  }
  func.func @transform_5(%arg0: i32) -> (i32, i32, i32) {
    %c0_i32 = arith.constant 0 : i32
    %c0_i32_0 = arith.constant 0 : i32
    %c0_i32_1 = arith.constant 0 : i32
    return %arg0, %c0_i32, %c0_i32_0 : i32, i32, i32
  }
}

</mosaic_0001>

<llo_original>
// kernel: forward_packed.1
$region0: #{forward_packed.1}
  #allocation0 [shape = 'u32[]', space=smem, size = 0x4, offset = 0x4, fixed_abs, tag = 'smem constant byte address 0x4 - core index']
  #allocation1 [shape = 'u32[144,128]{1,0:T(1,128)}', space=vmem, size = 0x12000, scoped, tag = 'internal scratch']
  %s0 = inlined_call_operand.hbm [shape: f32[2,32,64], index: 0, kind: input, shape index: {}]
  %s1 = inlined_call_operand.hbm [shape: f32[2,16,64], index: 1, kind: input, shape index: {}]
  %s2 = inlined_call_operand.hbm [shape: f32[2,16,64], index: 2, kind: input, shape index: {}]
  %s3 = inlined_call_operand.hbm [shape: f32[64,256], index: 3, kind: input, shape index: {}]
  %s4 = inlined_call_operand.hbm [shape: f32[64,256], index: 4, kind: input, shape index: {}]
  %s5 = inlined_call_operand.hbm [shape: f32[2,32,64], index: 5, kind: output, shape index: {}]
  %s6 = sld [smem:[#allocation0]]
  $region73: #{forward_packed.1} parent=0
    _
  %s8 = ssub.s32 1, %s6
  %s9 = scalar_select 0, %s8, %s6
  $region1: #{forward_packed.1} parent=0
    #allocation2 [shape = 'u8[32768]{0}', space=vmem, size = 0x8000, scoped, tag = 'input window, operand 0']
    #allocation3 [shape = 's32[2]{0}', space=sflag, size = 0x8, scoped, tag = 'scoped memory for forward_packed.1']
    #allocation4 [shape = 's32[2]{0}', space=sflag, size = 0x8, scoped, tag = 'scoped memory for forward_packed.1']
    #allocation5 [shape = 'u8[16384]{0}', space=vmem, size = 0x4000, scoped, tag = 'input window, operand 1']
    #allocation6 [shape = 's32[2]{0}', space=sflag, size = 0x8, scoped, tag = 'scoped memory for forward_packed.1']
    #allocation7 [shape = 'u8[16384]{0}', space=vmem, size = 0x4000, scoped, tag = 'input window, operand 2']
    #allocation8 [shape = 'u8[65536]{0}', space=vmem, size = 0x10000, scoped, tag = 'input window, operand 3, single buffered']
    #allocation9 [shape = 's32[1]{0}', space=sflag, size = 0x4, scoped, tag = 'scoped memory for forward_packed.1']
    #allocation10 [shape = 'u8[65536]{0}', space=vmem, size = 0x10000, scoped, tag = 'input window, operand 4, single buffered']
    #allocation11 [shape = 'u8[32768]{0}', space=vmem, size = 0x8000, scoped, tag = 'output window, operand 0']
    %10 = vsyncpa [#allocation3], 0
    %s11 = scalar_lea.sflag [#allocation3], 1
    %12 = vsyncpa %s11, 0
    %13 = vsyncpa [#allocation6], 0
    %s14 = scalar_lea.sflag [#allocation6], 1
    %15 = vsyncpa %s14, 0
    %16 = vsyncpa [#allocation9], 0
    %17 = vsyncpa [#allocation4], 0
    %s18 = scalar_lea.sflag [#allocation4], 1
    %19 = vsyncpa %s18, 0
    loop: start=0, step=1, limit=4
    $region2: #{forward_packed.1} parent=1 // loop_pre_header
      _
    $region3: #{forward_packed.1} parent=1 // loop_header
      %s21 = sphi 0, %s25
      %p22 = scmp.ge.s32.totalorder %s21, 4
      %s31 = sphi 0, %s33
      %s34 = sphi 0, %s31
      %s35 = sphi 0, %s34
      %s51 = sphi 0, %s35
      %s57 = sphi 0, %s59
      %s60 = sphi 0, %s57
      %s61 = sphi 0, %s60
      %s77 = sphi 0, %s61
      %s83 = sphi 0, %s85
      %s86 = sphi 0, %s83
      %s87 = sphi 0, %s86
      %s103 = sphi 0, %s87
      %s107 = sphi 0, %s107
      %s109 = sphi 0, %s107
      %s110 = sphi 0, %s109
      %s124 = sphi 0, %s110
      %s128 = sphi 0, %s128
      %s130 = sphi 0, %s128
      %s131 = sphi 0, %s130
      %s145 = sphi 0, %s131
      %s151 = sphi 0, %s153
      %s154 = sphi 0, %s151
      %s155 = sphi 0, %s154
      %s171 = sphi 0, %s155
    $region4: #{forward_packed.1} parent=1 // loop_header_branch
      %24 = sbr.rel (%p22) target = $region8
    $region5: #{forward_packed.1} parent=1 // loop_body
      %s26 = ssub.s32 %s21, 1
      %s27 = ssub.s32 %s21, 2
      %s28 = sadd.s32 %s21, 1
      %s29 = ssub.s32 %s21, %s28
      %p30 = scmp.eq.s32.totalorder %s29, 0
      %s32 = sadd.s32 %s31, 1
      %s33 = scalar_select %p30, %s31, %s32
      %p36 = pneg %p30
      %p37 = scmp.eq.s32.totalorder %s21, 1
      %p38 = por %p36, %p37
      %p39 = scmp.ne.s32.totalorder %s31, %s34
      %p40 = scmp.eq.s32.totalorder %s21, 0
      %p41 = por %p39, %p40
      %p42 = scmp.ne.s32.totalorder %s31, %s34
      %p43 = scmp.eq.s32.totalorder %s26, 1
      %p44 = por %p42, %p43
      %p45 = scmp.ne.s32.totalorder %s34, %s35
      %p46 = scmp.eq.s32.totalorder %s26, 0
      %p47 = por %p45, %p46
      %p48 = scmp.ne.s32.totalorder %s34, %s35
      %p49 = scmp.eq.s32.totalorder %s27, 1
      %p50 = por %p48, %p49
      %p52 = scmp.ne.s32.totalorder %s35, %s51
      %p53 = scmp.eq.s32.totalorder %s27, 0
      %p54 = por %p52, %p53
      %s55 = ssub.s32 %s21, %s28
      %p56 = scmp.eq.s32.totalorder %s55, 0
      %s58 = sadd.s32 %s57, 1
      %s59 = scalar_select %p56, %s57, %s58
      %p62 = pneg %p56
      %p63 = scmp.eq.s32.totalorder %s21, 1
      %p64 = por %p62, %p63
      %p65 = scmp.ne.s32.totalorder %s57, %s60
      %p66 = scmp.eq.s32.totalorder %s21, 0
      %p67 = por %p65, %p66
      %p68 = scmp.ne.s32.totalorder %s57, %s60
      %p69 = scmp.eq.s32.totalorder %s26, 1
      %p70 = por %p68, %p69
      %p71 = scmp.ne.s32.totalorder %s60, %s61
      %p72 = scmp.eq.s32.totalorder %s26, 0
      %p73 = por %p71, %p72
      %p74 = scmp.ne.s32.totalorder %s60, %s61
      %p75 = scmp.eq.s32.totalorder %s27, 1
      %p76 = por %p74, %p75
      %p78 = scmp.ne.s32.totalorder %s61, %s77
      %p79 = scmp.eq.s32.totalorder %s27, 0
      %p80 = por %p78, %p79
      %s81 = ssub.s32 %s21, %s28
      %p82 = scmp.eq.s32.totalorder %s81, 0
      %s84 = sadd.s32 %s83, 1
      %s85 = scalar_select %p82, %s83, %s84
      %p88 = pneg %p82
      %p89 = scmp.eq.s32.totalorder %s21, 1
      %p90 = por %p88, %p89
      %p91 = scmp.ne.s32.totalorder %s83, %s86
      %p92 = scmp.eq.s32.totalorder %s21, 0
      %p93 = por %p91, %p92
      %p94 = scmp.ne.s32.totalorder %s83, %s86
      %p95 = scmp.eq.s32.totalorder %s26, 1
      %p96 = por %p94, %p95
      %p97 = scmp.ne.s32.totalorder %s86, %s87
      %p98 = scmp.eq.s32.totalorder %s26, 0
      %p99 = por %p97, %p98
      %p100 = scmp.ne.s32.totalorder %s86, %s87
      %p101 = scmp.eq.s32.totalorder %s27, 1
      %p102 = por %p100, %p101
      %p104 = scmp.ne.s32.totalorder %s87, %s103
      %p105 = scmp.eq.s32.totalorder %s27, 0
      %p106 = por %p104, %p105
      %s108 = sadd.s32 %s107, 1
      %p111 = scmp.eq.s32.totalorder %s21, 1
      %p112 = scmp.ne.s32.totalorder %s107, %s109
      %p113 = scmp.eq.s32.totalorder %s21, 0
      %p114 = por %p112, %p113
      %p115 = scmp.ne.s32.totalorder %s107, %s109
      %p116 = scmp.eq.s32.totalorder %s26, 1
      %p117 = por %p115, %p116
      %p118 = scmp.ne.s32.totalorder %s109, %s110
      %p119 = scmp.eq.s32.totalorder %s26, 0
      %p120 = por %p118, %p119
      %p121 = scmp.ne.s32.totalorder %s109, %s110
      %p122 = scmp.eq.s32.totalorder %s27, 1
      %p123 = por %p121, %p122
      %p125 = scmp.ne.s32.totalorder %s110, %s124
      %p126 = scmp.eq.s32.totalorder %s27, 0
      %p127 = por %p125, %p126
      %s129 = sadd.s32 %s128, 1
      %p132 = scmp.eq.s32.totalorder %s21, 1
      %p133 = scmp.ne.s32.totalorder %s128, %s130
      %p134 = scmp.eq.s32.totalorder %s21, 0
      %p135 = por %p133, %p134
      %p136 = scmp.ne.s32.totalorder %s128, %s130
      %p137 = scmp.eq.s32.totalorder %s26, 1
      %p138 = por %p136, %p137
      %p139 = scmp.ne.s32.totalorder %s130, %s131
      %p140 = scmp.eq.s32.totalorder %s26, 0
      %p141 = por %p139, %p140
      %p142 = scmp.ne.s32.totalorder %s130, %s131
      %p143 = scmp.eq.s32.totalorder %s27, 1
      %p144 = por %p142, %p143
      %p146 = scmp.ne.s32.totalorder %s131, %s145
      %p147 = scmp.eq.s32.totalorder %s27, 0
      %p148 = por %p146, %p147
      %s149 = ssub.s32 %s21, %s28
      %p150 = scmp.eq.s32.totalorder %s149, 0
      %s152 = sadd.s32 %s151, 1
      %s153 = scalar_select %p150, %s151, %s152
      %p156 = pneg %p150
      %p157 = scmp.eq.s32.totalorder %s21, 1
      %p158 = por %p156, %p157
      %p159 = scmp.ne.s32.totalorder %s151, %s154
      %p160 = scmp.eq.s32.totalorder %s21, 0
      %p161 = por %p159, %p160
      %p162 = scmp.ne.s32.totalorder %s151, %s154
      %p163 = scmp.eq.s32.totalorder %s26, 1
      %p164 = por %p162, %p163
      %p165 = scmp.ne.s32.totalorder %s154, %s155
      %p166 = scmp.eq.s32.totalorder %s26, 0
      %p167 = por %p165, %p166
      %p168 = scmp.ne.s32.totalorder %s154, %s155
      %p169 = scmp.eq.s32.totalorder %s27, 1
      %p170 = por %p168, %p169
      %p172 = scmp.ne.s32.totalorder %s155, %s171
      %p173 = scmp.eq.s32.totalorder %s27, 0
      %p174 = por %p172, %p173
      %p175 = scmp.le.s32.totalorder 1, %s21
      %p176 = scmp.lt.s32.totalorder %s21, 3
      %p177 = pnand %p175, %p176
      %p178 = pneg %p177
      // Predicated region
      $region9: #{forward_packed.1} parent=5 // pred_check
        _
      $region10: #{forward_packed.1} parent=5 // pred_check_branch
        %180 = sbr.rel (%p177) target = $region12
      $region11: #{forward_packed.1} parent=5 // pred_region
        %s181 = ssub.s32 %s21, 1
        // Predicated region
        $region13: #{forward_packed.1} parent=11 // pred_check
          %p182 = pneg %p120
        $region14: #{forward_packed.1} parent=11 // pred_check_branch
          %184 = sbr.rel (%p182) target = $region16
        $region15: #{forward_packed.1} parent=11 // pred_region
          %s186 = ssub.s32 2048, 2048
          %187 = vsyncadd [#allocation9], %s186
          %s188 = sshll.u32 [#allocation8], 4
          %s189 = int_to_ptr.vmem [resolvable:$true] %s188
          %194 = dma.hbm_to_vmem [thread:$0]  %s3, 2048, %s189, [#allocation9], 256, 256, 16
        $region16: #{forward_packed.1} parent=11 // pred_fallthru
          _
        // Predicated region
        $region17: #{forward_packed.1} parent=11 // pred_check
          %p195 = pneg %p141
        $region18: #{forward_packed.1} parent=11 // pred_check_branch
          %197 = sbr.rel (%p195) target = $region20
        $region19: #{forward_packed.1} parent=11 // pred_region
          %s199 = ssub.s32 2048, 2048
          %200 = vsyncadd [#allocation9], %s199
          %s201 = sshll.u32 [#allocation10], 4
          %s202 = int_to_ptr.vmem [resolvable:$true] %s201
          %207 = dma.hbm_to_vmem [thread:$0]  %s4, 2048, %s202, [#allocation9], 256, 256, 16
        $region20: #{forward_packed.1} parent=11 // pred_fallthru
          _
      $region12: #{forward_packed.1} parent=5 // pred_fallthru
        _
      %p208 = scmp.lt.s32.totalorder %s21, 2
      // Predicated region
      $region21: #{forward_packed.1} parent=5 // pred_check
        %p209 = pneg %p208
      $region22: #{forward_packed.1} parent=5 // pred_check_branch
        %211 = sbr.rel (%p209) target = $region24
      $region23: #{forward_packed.1} parent=5 // pred_region
        // Predicated region
        $region25: #{forward_packed.1} parent=23 // pred_check
          %p212 = pneg %p41
        $region26: #{forward_packed.1} parent=23 // pred_check_branch
          %214 = sbr.rel (%p212) target = $region28
        $region27: #{forward_packed.1} parent=23 // pred_region
          %s215 = sand.u32 %s31, 1
          %s216 = scalar_lea.sflag [#allocation3], %s215
          %s217 = sand.u32 %s31, 1
          %s218 = smul.addr %s217, 32
          %s219 = scalar_lea.vmem [#allocation2], %s218
          %s221 = ssub.s32 512, 512
          %222 = vsyncadd %s216, %s221
          %s223 = smul.addr %s21, 4
          %s224 = smul.addr %s223, 128
          %s225 = scalar_lea.hbm %s0, %s224
          %s226 = sshll.u32 %s219, 4
          %s227 = int_to_ptr.vmem [resolvable:$true] %s226
          %232 = dma.hbm_to_vmem [thread:$0]  %s225, 512, %s227, %s216, 128, 128, 8
        $region28: #{forward_packed.1} parent=23 // pred_fallthru
          _
        // Predicated region
        $region29: #{forward_packed.1} parent=23 // pred_check
          %p233 = pneg %p67
        $region30: #{forward_packed.1} parent=23 // pred_check_branch
          %235 = sbr.rel (%p233) target = $region32
        $region31: #{forward_packed.1} parent=23 // pred_region
          %s236 = sand.u32 %s21, 1
          %s237 = scalar_lea.sflag [#allocation6], %s236
          %s238 = sand.u32 %s57, 1
          %s239 = smul.addr %s238, 16
          %s240 = scalar_lea.vmem [#allocation5], %s239
          %s242 = ssub.s32 256, 256
          %243 = vsyncadd %s237, %s242
          %s244 = smul.addr %s21, 2
          %s245 = smul.addr %s244, 128
          %s246 = scalar_lea.hbm %s1, %s245
          %s247 = sshll.u32 %s240, 4
          %s248 = int_to_ptr.vmem [resolvable:$true] %s247
          %253 = dma.hbm_to_vmem [thread:$0]  %s246, 256, %s248, %s237, 128, 128, 8
        $region32: #{forward_packed.1} parent=23 // pred_fallthru
          _
        // Predicated region
        $region33: #{forward_packed.1} parent=23 // pred_check
          %p254 = pneg %p93
        $region34: #{forward_packed.1} parent=23 // pred_check_branch
          %256 = sbr.rel (%p254) target = $region36
        $region35: #{forward_packed.1} parent=23 // pred_region
          %s257 = sand.u32 %s21, 1
          %s258 = scalar_lea.sflag [#allocation6], %s257
          %s259 = sand.u32 %s83, 1
          %s260 = smul.addr %s259, 16
          %s261 = scalar_lea.vmem [#allocation7], %s260
          %s263 = ssub.s32 256, 256
          %264 = vsyncadd %s258, %s263
          %s265 = smul.addr %s21, 2
          %s266 = smul.addr %s265, 128
          %s267 = scalar_lea.hbm %s2, %s266
          %s268 = sshll.u32 %s261, 4
          %s269 = int_to_ptr.vmem [resolvable:$true] %s268
          %274 = dma.hbm_to_vmem [thread:$0]  %s267, 256, %s269, %s258, 128, 128, 8
        $region36: #{forward_packed.1} parent=23 // pred_fallthru
          _
      $region24: #{forward_packed.1} parent=5 // pred_fallthru
        _
      %p275 = scmp.le.s32.totalorder 1, %s21
      %p276 = scmp.lt.s32.totalorder %s21, 3
      %p277 = pnand %p275, %p276
      %p278 = pneg %p277
      // Predicated region
      $region37: #{forward_packed.1} parent=5 // pred_check
        _
      $region38: #{forward_packed.1} parent=5 // pred_check_branch
        %280 = sbr.rel (%p277) target = $region40
      $region39: #{forward_packed.1} parent=5 // pred_region
        %s281 = ssub.s32 %s21, 1
        %s282 = sand.u32 %s34, 1
        %s283 = scalar_lea.sflag [#allocation3], %s282
        %s284 = sand.u32 %s34, 1
        %s285 = smul.addr %s284, 32
        %s286 = scalar_lea.vmem [#allocation2], %s285
        // Predicated region
        $region41: #{forward_packed.1} parent=39 // pred_check
          %p287 = pneg %p47
        $region42: #{forward_packed.1} parent=39 // pred_check_branch
          %289 = sbr.rel (%p287) target = $region44
        $region43: #{forward_packed.1} parent=39 // pred_region
          %290 = dma.done %s283, 512
        $region44: #{forward_packed.1} parent=39 // pred_fallthru
          _
        %s291 = sand.u32 %s26, 1
        %s292 = scalar_lea.sflag [#allocation6], %s291
        %s293 = sand.u32 %s60, 1
        %s294 = smul.addr %s293, 16
        %s295 = scalar_lea.vmem [#allocation5], %s294
        // Predicated region
        $region45: #{forward_packed.1} parent=39 // pred_check
          %p296 = pneg %p73
        $region46: #{forward_packed.1} parent=39 // pred_check_branch
          %298 = sbr.rel (%p296) target = $region48
        $region47: #{forward_packed.1} parent=39 // pred_region
          %299 = dma.done %s292, 256
        $region48: #{forward_packed.1} parent=39 // pred_fallthru
          _
        %s300 = sand.u32 %s26, 1
        %s301 = scalar_lea.sflag [#allocation6], %s300
        %s302 = sand.u32 %s86, 1
        %s303 = smul.addr %s302, 16
        %s304 = scalar_lea.vmem [#allocation7], %s303
        // Predicated region
        $region49: #{forward_packed.1} parent=39 // pred_check
          %p305 = pneg %p99
        $region50: #{forward_packed.1} parent=39 // pred_check_branch
          %307 = sbr.rel (%p305) target = $region52
        $region51: #{forward_packed.1} parent=39 // pred_region
          %308 = dma.done %s301, 256
        $region52: #{forward_packed.1} parent=39 // pred_fallthru
          _
        // Predicated region
        $region53: #{forward_packed.1} parent=39 // pred_check
          %p309 = pneg %p120
        $region54: #{forward_packed.1} parent=39 // pred_check_branch
          %311 = sbr.rel (%p309) target = $region56
        $region55: #{forward_packed.1} parent=39 // pred_region
          %312 = dma.done [#allocation9], 2048
        $region56: #{forward_packed.1} parent=39 // pred_fallthru
          _
        // Predicated region
        $region57: #{forward_packed.1} parent=39 // pred_check
          %p313 = pneg %p141
        $region58: #{forward_packed.1} parent=39 // pred_check_branch
          %315 = sbr.rel (%p313) target = $region60
        $region59: #{forward_packed.1} parent=39 // pred_region
          %316 = dma.done [#allocation9], 2048
        $region60: #{forward_packed.1} parent=39 // pred_fallthru
          _
        %s317 = sand.u32 %s34, 1
        %s318 = scalar_lea.sflag [#allocation3], %s317
        %s319 = sand.u32 %s34, 1
        %s320 = smul.addr %s319, 32
        %s321 = scalar_lea.vmem [#allocation2], %s320
        %p322 = pneg %p47
        %p323 = pneg %p44
        %s324 = sand.u32 %s26, 1
        %s325 = scalar_lea.sflag [#allocation6], %s324
        %s326 = sand.u32 %s60, 1
        %s327 = smul.addr %s326, 16
        %s328 = scalar_lea.vmem [#allocation5], %s327
        %p329 = pneg %p73
        %p330 = pneg %p70
        %s331 = sand.u32 %s26, 1
        %s332 = scalar_lea.sflag [#allocation6], %s331
        %s333 = sand.u32 %s86, 1
        %s334 = smul.addr %s333, 16
        %s335 = scalar_lea.vmem [#allocation7], %s334
        %p336 = pneg %p99
        %p337 = pneg %p96
        %p338 = pneg %p120
        %p339 = pneg %p117
        %p340 = pneg %p141
        %p341 = pneg %p138
        %p342 = pneg %p167
        %p343 = pneg %p164
        %s344 = sand.u32 %s154, 1
        %s345 = scalar_lea.sflag [#allocation4], %s344
        %s346 = sand.u32 %s154, 1
        %s347 = smul.addr %s346, 32
        %s348 = scalar_lea.vmem [#allocation11], %s347
        %v349 = vld [vmem:[%s286] sm:$0xff]
        %v350 = vld [vmem:[%s286 + $0x8] sm:$0xff]
        %v351 = vld [vmem:[%s286 + $0x10] sm:$0xff]
        %v352 = vld [vmem:[%s286 + $0x18] sm:$0xff]
        %v353 = vld [vmem:[%s295] sm:$0xff]
        %v354 = vld [vmem:[%s295 + $0x8] sm:$0xff]
        %v355 = vld [vmem:[%s304] sm:$0xff]
        %v356 = vld [vmem:[%s304 + $0x8] sm:$0xff]
        %v357 = vld [vmem:[#allocation8] sm:$0xff]
        %v358 = vld [vmem:[#allocation8 + $0x8] sm:$0xff]
        %v359 = vld [vmem:[#allocation8 + $0x10] sm:$0xff]
        %v360 = vld [vmem:[#allocation8 + $0x18] sm:$0xff]
        %v361 = vld [vmem:[#allocation8 + $0x20] sm:$0xff]
        %v362 = vld [vmem:[#allocation8 + $0x28] sm:$0xff]
        %v363 = vld [vmem:[#allocation8 + $0x30] sm:$0xff]
        %v364 = vld [vmem:[#allocation8 + $0x38] sm:$0xff]
        %v365 = vld [vmem:[#allocation8 + $0x40] sm:$0xff]
        %v366 = vld [vmem:[#allocation8 + $0x48] sm:$0xff]
        %v367 = vld [vmem:[#allocation8 + $0x50] sm:$0xff]
        %v368 = vld [vmem:[#allocation8 + $0x58] sm:$0xff]
        %v369 = vld [vmem:[#allocation8 + $0x60] sm:$0xff]
        %v370 = vld [vmem:[#allocation8 + $0x68] sm:$0xff]
        %v371 = vld [vmem:[#allocation8 + $0x70] sm:$0xff]
        %v372 = vld [vmem:[#allocation8 + $0x78] sm:$0xff]
        %v373 = vld [vmem:[#allocation10] sm:$0xff]
        %v374 = vld [vmem:[#allocation10 + $0x8] sm:$0xff]
        %v375 = vld [vmem:[#allocation10 + $0x10] sm:$0xff]
        %v376 = vld [vmem:[#allocation10 + $0x18] sm:$0xff]
        %v377 = vld [vmem:[#allocation10 + $0x20] sm:$0xff]
        %v378 = vld [vmem:[#allocation10 + $0x28] sm:$0xff]
        %v379 = vld [vmem:[#allocation10 + $0x30] sm:$0xff]
        %v380 = vld [vmem:[#allocation10 + $0x38] sm:$0xff]
        %v381 = vld [vmem:[#allocation10 + $0x40] sm:$0xff]
        %v382 = vld [vmem:[#allocation10 + $0x48] sm:$0xff]
        %v383 = vld [vmem:[#allocation10 + $0x50] sm:$0xff]
        %v384 = vld [vmem:[#allocation10 + $0x58] sm:$0xff]
        %v385 = vld [vmem:[#allocation10 + $0x60] sm:$0xff]
        %v386 = vld [vmem:[#allocation10 + $0x68] sm:$0xff]
        %v387 = vld [vmem:[#allocation10 + $0x70] sm:$0xff]
        %v388 = vld [vmem:[#allocation10 + $0x78] sm:$0xff]
        %v389 = vlaneseq
        %v390 = vand.u32 %v389, 127
        %v391 = vadd.s32 %v390, 128
        %vm392 = vcmp.lt.s32.totalorder %v390, 128
        %vm393 = vcmp.lt.s32.totalorder %v391, 128
        %v394 = vsel %vm392, 1.0, -1.0
        %v395 = vsel %vm393, 1.0, -1.0
        %vm396 = vcmp.lt.s32.totalorder %v390, 32
        %vm397 = vcmask 523264
        %v399 = vsel %vm397, %v349, 0
        %v402 = vsel %vm397, %v350, 0
        %v405 = vsel %vm397, %v351, 0
        %v408 = vsel %vm397, %v352, 0
        %410 = vmatprep.subr.mxu0 0.0
        %411 = vmatpush1.msra.mxu0 0.0
        %412 = vmatprep.subr.mxu0 0.0
        %413 = vmatpush1.msra.mxu0 0.0
        %414 = vmatprep.subr.mxu0 0.0
        %415 = vmatpush1.msra.mxu0 0.0
        %416 = vmatprep.subr.mxu0 0.0
        %417 = vmatpush1.msra.mxu0 0.0
        %418 = vmatprep.subr.mxu0 0.0
        %419 = vmatpush1.msra.mxu0 0.0
        %420 = vmatprep.subr.mxu0 0.0
        %421 = vmatpush1.msra.mxu0 0.0
        %422 = vmatprep.subr.mxu0 0.0
        %423 = vmatpush1.msra.mxu0 0.0
        %424 = vmatprep.subr.mxu0 0.0
        %425 = vmatpush1.msra.mxu0 0.0
        %426 = vmatprep.subr.mxu0 %v372
        %427 = vmatpush1.msra.mxu0 %v371
        %428 = vmatprep.subr.mxu0 %v370
        %429 = vmatpush1.msra.mxu0 %v369
        %430 = vmatprep.subr.mxu0 %v368
        %431 = vmatpush1.msra.mxu0 %v367
        %432 = vmatprep.subr.mxu0 %v366
        %433 = vmatpush1.msra.mxu0 %v365
        %434 = vmatprep.subr.mxu0 %v364
        %435 = vmatpush1.msra.mxu0 %v363
        %436 = vmatprep.subr.mxu0 %v362
        %437 = vmatpush1.msra.mxu0 %v361
        %438 = vmatprep.subr.mxu0 %v360
        %439 = vmatpush1.msra.mxu0 %v359
        %440 = vmatprep.subr.mxu0 %v358
        %441 = vmatpush1.msra.mxu0 %v357
        %442 = vmatprep.subr.mxu0 0.0
        %443 = vmatpush2.msra.mxu0 0.0
        %444 = vmatprep.subr.mxu0 0.0
        %445 = vmatpush2.msra.mxu0 0.0
        %446 = vmatprep.subr.mxu0 0.0
        %447 = vmatpush2.msra.mxu0 0.0
        %448 = vmatprep.subr.mxu0 0.0
        %449 = vmatpush2.msra.mxu0 0.0
        %450 = vmatprep.subr.mxu0 0.0
        %451 = vmatpush2.msra.mxu0 0.0
        %452 = vmatprep.subr.mxu0 0.0
        %453 = vmatpush2.msra.mxu0 0.0
        %454 = vmatprep.subr.mxu0 0.0
        %455 = vmatpush2.msra.mxu0 0.0
        %456 = vmatprep.subr.mxu0 0.0
        %457 = vmatpush2.msra.mxu0 0.0
        %458 = vmatprep.subr.mxu0 0.0
        %459 = vmatpush2.msra.mxu0 0.0
        %460 = vmatprep.subr.mxu0 0.0
        %461 = vmatpush2.msra.mxu0 0.0
        %462 = vmatprep.subr.mxu0 0.0
        %463 = vmatpush2.msra.mxu0 0.0
        %464 = vmatprep.subr.mxu0 0.0
        %465 = vmatpush2.msra.mxu0 0.0
        %466 = vmatprep.subr.mxu0 0.0
        %467 = vmatpush2.msra.mxu0 0.0
        %468 = vmatprep.subr.mxu0 0.0
        %469 = vmatpush2.msra.mxu0 0.0
        %470 = vmatprep.subr.mxu0 0.0
        %471 = vmatpush2.msra.mxu0 0.0
        %472 = vmatprep.subr.mxu0 0.0
        %473 = vmatpush2.msra.mxu0 0.0
        %474 = vmatprep.mubr.f32.mxu0 0.0
        %475 = vmatmul.mubr.f32.gmra.mxu0 %v399
        %v476 = vpop.f32.mrf.mxu0
        %v477 = vadd.f32 0.0, %v476
        %v478 = vpop.f32.mrf.mxu0
        %v479 = vadd.f32 0.0, %v478
        %480 = vmatprep.mubr.f32.mxu0 0.0
        %481 = vmatmul.mubr.f32.gmra.mxu0 %v402
        %v482 = vpop.f32.mrf.mxu0
        %v483 = vadd.f32 0.0, %v482
        %v484 = vpop.f32.mrf.mxu0
        %v485 = vadd.f32 0.0, %v484
        %486 = vmatprep.mubr.f32.mxu0 0.0
        %487 = vmatmul.mubr.f32.gmra.mxu0 %v405
        %v488 = vpop.f32.mrf.mxu0
        %v489 = vadd.f32 0.0, %v488
        %v490 = vpop.f32.mrf.mxu0
        %v491 = vadd.f32 0.0, %v490
        %492 = vmatprep.mubr.f32.mxu0 0.0
        %493 = vmatmul.mubr.f32.gmra.mxu0 %v408
        %v494 = vpop.f32.mrf.mxu0
        %v495 = vadd.f32 0.0, %v494
        %v496 = vpop.f32.mrf.mxu0
        %v497 = vadd.f32 0.0, %v496
        %498 = vdwg.mxu0
        %v499 = vmul.f32 %v477, %v477
        %v500 = vmul.f32 %v479, %v479
        %v501 = vmul.f32 %v483, %v483
        %v502 = vmul.f32 %v485, %v485
        %v503 = vmul.f32 %v489, %v489
        %v504 = vmul.f32 %v491, %v491
        %v505 = vmul.f32 %v495, %v495
        %v506 = vmul.f32 %v497, %v497
        %v507 = vadd.f32 %v499, %v500
        %508 = vadd.xlane.f32.xlu0 %v507
        %v509 = vpop.xlane.xlu0 %508
        %v510 = vadd.f32 %v501, %v502
        %511 = vadd.xlane.f32.xlu0 %v510
        %v512 = vpop.xlane.xlu0 %511
        %v513 = vadd.f32 %v503, %v504
        %514 = vadd.xlane.f32.xlu0 %v513
        %v515 = vpop.xlane.xlu0 %514
        %v516 = vadd.f32 %v505, %v506
        %517 = vadd.xlane.f32.xlu0 %v516
        %v518 = vpop.xlane.xlu0 %517
        %v519 = vadd.f32 %v509, 1e-12
        %v520 = vadd.f32 %v512, 1e-12
        %v521 = vadd.f32 %v515, 1e-12
        %v522 = vadd.f32 %v518, 1e-12
        %v523 = vrsqrt.pop %v519
        %v524 = vrsqrt.pop %v520
        %v525 = vrsqrt.pop %v521
        %v526 = vrsqrt.pop %v522
        %v527 = vmul.f32 %v477, %v523
        %v528 = vmul.f32 %v479, %v523
        %v529 = vmul.f32 %v483, %v524
        %v530 = vmul.f32 %v485, %v524
        %v531 = vmul.f32 %v489, %v525
        %v532 = vmul.f32 %v491, %v525
        %v533 = vmul.f32 %v495, %v526
        %v534 = vmul.f32 %v497, %v526
        %v535 = vmul.f32 %v527, %v394
        %v536 = vmul.f32 %v528, %v395
        %v537 = vmul.f32 %v529, %v394
        %v538 = vmul.f32 %v530, %v395
        %v539 = vmul.f32 %v531, %v394
        %v540 = vmul.f32 %v532, %v395
        %v541 = vmul.f32 %v533, %v394
        %v542 = vmul.f32 %v534, %v395
        %543 = vmatprep.subr.mxu0 0.0
        %544 = vmatpush1.xpose.msra.mxu0 0.0
        %545 = vmatprep.subr.mxu0 0.0
        %546 = vmatpush1.xpose.msra.mxu0 0.0
        %547 = vmatprep.subr.mxu0 0.0
        %548 = vmatpush1.xpose.msra.mxu0 0.0
        %549 = vmatprep.subr.mxu0 0.0
        %550 = vmatpush1.xpose.msra.mxu0 0.0
        %551 = vmatprep.subr.mxu0 0.0
        %552 = vmatpush1.xpose.msra.mxu0 0.0
        %553 = vmatprep.subr.mxu0 0.0
        %554 = vmatpush1.xpose.msra.mxu0 0.0
        %555 = vmatprep.subr.mxu0 0.0
        %556 = vmatpush1.xpose.msra.mxu0 0.0
        %557 = vmatprep.subr.mxu0 0.0
        %558 = vmatpush1.xpose.msra.mxu0 0.0
        %559 = vmatprep.subr.mxu0 %v533
        %560 = vmatpush1.xpose.msra.mxu0 %v534
        %561 = vmatprep.subr.mxu0 %v531
        %562 = vmatpush1.xpose.msra.mxu0 %v532
        %563 = vmatprep.subr.mxu0 %v529
        %564 = vmatpush1.xpose.msra.mxu0 %v530
        %565 = vmatprep.subr.mxu0 %v527
        %566 = vmatpush1.xpose.msra.mxu0 %v528
        %567 = vmatprep.subr.mxu0 %v542
        %568 = vmatpush1.xpose.msra.mxu0 %v541
        %569 = vmatprep.subr.mxu0 %v540
        %570 = vmatpush1.xpose.msra.mxu0 %v539
        %571 = vmatprep.subr.mxu0 %v538
        %572 = vmatpush1.xpose.msra.mxu0 %v537
        %573 = vmatprep.subr.mxu0 %v536
        %574 = vmatpush1.xpose.msra.mxu0 %v535
        %575 = vmatprep.subr.mxu0 0.0
        %576 = vmatpush2.xpose.msra.mxu0 0.0
        %577 = vmatprep.subr.mxu0 0.0
        %578 = vmatpush2.xpose.msra.mxu0 0.0
        %579 = vmatprep.subr.mxu0 0.0
        %580 = vmatpush2.xpose.msra.mxu0 0.0
        %581 = vmatprep.subr.mxu0 0.0
        %582 = vmatpush2.xpose.msra.mxu0 0.0
        %583 = vmatprep.subr.mxu0 0.0
        %584 = vmatpush2.xpose.msra.mxu0 0.0
        %585 = vmatprep.subr.mxu0 0.0
        %586 = vmatpush2.xpose.msra.mxu0 0.0
        %587 = vmatprep.subr.mxu0 0.0
        %588 = vmatpush2.xpose.msra.mxu0 0.0
        %589 = vmatprep.subr.mxu0 0.0
        %590 = vmatpush2.xpose.msra.mxu0 0.0
        %591 = vmatprep.subr.mxu0 0.0
        %592 = vmatpush2.xpose.msra.mxu0 0.0
        %593 = vmatprep.subr.mxu0 0.0
        %594 = vmatpush2.xpose.msra.mxu0 0.0
        %595 = vmatprep.subr.mxu0 0.0
        %596 = vmatpush2.xpose.msra.mxu0 0.0
        %597 = vmatprep.subr.mxu0 0.0
        %598 = vmatpush2.xpose.msra.mxu0 0.0
        %599 = vmatprep.subr.mxu0 0.0
        %600 = vmatpush2.xpose.msra.mxu0 0.0
        %601 = vmatprep.subr.mxu0 0.0
        %602 = vmatpush2.xpose.msra.mxu0 0.0
        %603 = vmatprep.subr.mxu0 0.0
        %604 = vmatpush2.xpose.msra.mxu0 0.0
        %605 = vmatprep.subr.mxu0 0.0
        %606 = vmatpush2.xpose.msra.mxu0 0.0
        %607 = vmatprep.mubr.f32.mxu0 %v528
        %608 = vmatmul.mubr.f32.gmra.mxu0 %v527
        %v609 = vpop.f32.mrf.mxu0
        %v610 = vadd.f32 0.0, %v609
        %v611 = vpop.f32.mrf.mxu0
        %612 = vmatprep.mubr.f32.mxu0 %v530
        %613 = vmatmul.mubr.f32.gmra.mxu0 %v529
        %v614 = vpop.f32.mrf.mxu0
        %v615 = vadd.f32 0.0, %v614
        %v616 = vpop.f32.mrf.mxu0
        %617 = vmatprep.mubr.f32.mxu0 %v532
        %618 = vmatmul.mubr.f32.gmra.mxu0 %v531
        %v619 = vpop.f32.mrf.mxu0
        %v620 = vadd.f32 0.0, %v619
        %v621 = vpop.f32.mrf.mxu0
        %622 = vmatprep.mubr.f32.mxu0 %v534
        %623 = vmatmul.mubr.f32.gmra.mxu0 %v533
        %v624 = vpop.f32.mrf.mxu0
        %v625 = vadd.f32 0.0, %v624
        %v626 = vpop.f32.mrf.mxu0
        %627 = vdwg.mxu0
        %v628 = vmul.f32 %v610, 30.0
        %v629 = vmul.f32 %v615, 30.0
        %v630 = vmul.f32 %v620, 30.0
        %v631 = vmul.f32 %v625, 30.0
        %v632 = vsel %vm396, %v628, -inf
        %v633 = vsel %vm396, %v629, -inf
        %v634 = vsel %vm396, %v630, -inf
        %v635 = vsel %vm396, %v631, -inf
        %v636 = vsel %vm397, %v632, -inf
        %637 = vmax.xlane.f32.xlu0 %v636
        %v638 = vpop.xlane.xlu0 %637
        %v639 = vsel %vm397, %v633, -inf
        %640 = vmax.xlane.f32.xlu0 %v639
        %v641 = vpop.xlane.xlu0 %640
        %v642 = vsel %vm397, %v634, -inf
        %643 = vmax.xlane.f32.xlu0 %v642
        %v644 = vpop.xlane.xlu0 %643
        %v645 = vsel %vm397, %v635, -inf
        %646 = vmax.xlane.f32.xlu0 %v645
        %v647 = vpop.xlane.xlu0 %646
        %v648 = vsel %vm396, -inf, %v628
        %v649 = vsel %vm396, -inf, %v629
        %v650 = vsel %vm396, -inf, %v630
        %v651 = vsel %vm396, -inf, %v631
        %v652 = vsel %vm397, %v648, -inf
        %653 = vmax.xlane.f32.xlu0 %v652
        %v654 = vpop.xlane.xlu0 %653
        %v655 = vsel %vm397, %v649, -inf
        %656 = vmax.xlane.f32.xlu0 %v655
        %v657 = vpop.xlane.xlu0 %656
        %v658 = vsel %vm397, %v650, -inf
        %659 = vmax.xlane.f32.xlu0 %v658
        %v660 = vpop.xlane.xlu0 %659
        %v661 = vsel %vm397, %v651, -inf
        %662 = vmax.xlane.f32.xlu0 %v661
        %v663 = vpop.xlane.xlu0 %662
        %v664 = vsel %vm396, %v638, %v654
        %v665 = vsel %vm396, %v641, %v657
        %v666 = vsel %vm396, %v644, %v660
        %v667 = vsel %vm396, %v647, %v663
        %v668 = vsub.f32 %v628, %v664
        %v669 = vsub.f32 %v629, %v665
        %v670 = vsub.f32 %v630, %v666
        %v671 = vsub.f32 %v631, %v667
        %v672 = vmul.f32 %v668, 1.442695
        %v673 = vpow.pop %v672
        %v674 = vmul.f32 %v669, 1.442695
        %v675 = vpow.pop %v674
        %v676 = vmul.f32 %v670, 1.442695
        %v677 = vpow.pop %v676
        %v678 = vmul.f32 %v671, 1.442695
        %v679 = vpow.pop %v678
        %v680 = vsel %vm396, %v673, 0.0
        %v681 = vsel %vm396, %v675, 0.0
        %v682 = vsel %vm396, %v677, 0.0
        %v683 = vsel %vm396, %v679, 0.0
        %v684 = vsel %vm397, %v680, 0.0
        %685 = vadd.xlane.f32.xlu0 %v684
        %v686 = vpop.xlane.xlu0 %685
        %v687 = vsel %vm397, %v681, 0.0
        %688 = vadd.xlane.f32.xlu0 %v687
        %v689 = vpop.xlane.xlu0 %688
        %v690 = vsel %vm397, %v682, 0.0
        %691 = vadd.xlane.f32.xlu0 %v690
        %v692 = vpop.xlane.xlu0 %691
        %v693 = vsel %vm397, %v683, 0.0
        %694 = vadd.xlane.f32.xlu0 %v693
        %v695 = vpop.xlane.xlu0 %694
        %v696 = vsel %vm396, 0.0, %v673
        %v697 = vsel %vm396, 0.0, %v675
        %v698 = vsel %vm396, 0.0, %v677
        %v699 = vsel %vm396, 0.0, %v679
        %v700 = vsel %vm397, %v696, 0.0
        %701 = vadd.xlane.f32.xlu0 %v700
        %v702 = vpop.xlane.xlu0 %701
        %v703 = vsel %vm397, %v697, 0.0
        %704 = vadd.xlane.f32.xlu0 %v703
        %v705 = vpop.xlane.xlu0 %704
        %v706 = vsel %vm397, %v698, 0.0
        %707 = vadd.xlane.f32.xlu0 %v706
        %v708 = vpop.xlane.xlu0 %707
        %v709 = vsel %vm397, %v699, 0.0
        %710 = vadd.xlane.f32.xlu0 %v709
        %v711 = vpop.xlane.xlu0 %710
        %v712 = vsel %vm396, %v686, %v702
        %v713 = vsel %vm396, %v689, %v705
        %v714 = vsel %vm396, %v692, %v708
        %v715 = vsel %vm396, %v695, %v711
        %v716 = vrcp.pop %v712
        %v717 = vmul.f32 %v673, %v716
        %v718 = vrcp.pop %v713
        %v719 = vmul.f32 %v675, %v718
        %v720 = vrcp.pop %v714
        %v721 = vmul.f32 %v677, %v720
        %v722 = vrcp.pop %v715
        %v723 = vmul.f32 %v679, %v722
        %v724 = vsub.f32 0.0, %v349
        %v725 = vsub.f32 0.0, %v350
        %v726 = vsub.f32 0.0, %v351
        %v727 = vsub.f32 0.0, %v352
        %732 = vrot.lane.b32.xlu0 %v724, 96
        %v733 = vpop.permute.xlu0 %732
        %734 = vrot.lane.b32.xlu0 %v725, 96
        %v735 = vpop.permute.xlu0 %734
        %736 = vrot.lane.b32.xlu0 %v726, 96
        %v737 = vpop.permute.xlu0 %736
        %738 = vrot.lane.b32.xlu0 %v727, 96
        %v739 = vpop.permute.xlu0 %738
        %744 = vrot.lane.b32.xlu0 %v349, 32
        %v745 = vpop.permute.xlu0 %744
        %746 = vrot.lane.b32.xlu0 %v350, 32
        %v747 = vpop.permute.xlu0 %746
        %748 = vrot.lane.b32.xlu0 %v351, 32
        %v749 = vpop.permute.xlu0 %748
        %750 = vrot.lane.b32.xlu0 %v352, 32
        %v751 = vpop.permute.xlu0 %750
        %vm756 = vcmask 261120
        %v757 = vsel %vm756, %v733, %v745
        %v758 = vsel %vm756, %v735, %v747
        %v759 = vsel %vm756, %v737, %v749
        %v760 = vsel %vm756, %v739, %v751
        %v762 = vsel %vm397, %v717, 0
        %v765 = vsel %vm397, %v719, 0
        %v768 = vsel %vm397, %v721, 0
        %v771 = vsel %vm397, %v723, 0
        %773 = vmatprep.subr.mxu0 0.0
        %774 = vmatpush1.msra.mxu0 0.0
        %775 = vmatprep.subr.mxu0 0.0
        %776 = vmatpush1.msra.mxu0 0.0
        %777 = vmatprep.subr.mxu0 0.0
        %778 = vmatpush1.msra.mxu0 0.0
        %779 = vmatprep.subr.mxu0 0.0
        %780 = vmatpush1.msra.mxu0 0.0
        %781 = vmatprep.subr.mxu0 0.0
        %782 = vmatpush1.msra.mxu0 0.0
        %783 = vmatprep.subr.mxu0 0.0
        %784 = vmatpush1.msra.mxu0 0.0
        %785 = vmatprep.subr.mxu0 0.0
        %786 = vmatpush1.msra.mxu0 0.0
        %787 = vmatprep.subr.mxu0 0.0
        %788 = vmatpush1.msra.mxu0 0.0
        %789 = vmatprep.subr.mxu0 0.0
        %790 = vmatpush1.msra.mxu0 %v760
        %791 = vmatprep.subr.mxu0 0.0
        %792 = vmatpush1.msra.mxu0 %v759
        %793 = vmatprep.subr.mxu0 0.0
        %794 = vmatpush1.msra.mxu0 %v758
        %795 = vmatprep.subr.mxu0 0.0
        %796 = vmatpush1.msra.mxu0 %v757
        %797 = vmatprep.subr.mxu0 0.0
        %798 = vmatpush1.msra.mxu0 %v352
        %799 = vmatprep.subr.mxu0 0.0
        %800 = vmatpush1.msra.mxu0 %v351
        %801 = vmatprep.subr.mxu0 0.0
        %802 = vmatpush1.msra.mxu0 %v350
        %803 = vmatprep.subr.mxu0 0.0
        %804 = vmatpush1.msra.mxu0 %v349
        %805 = vmatprep.subr.mxu0 0.0
        %806 = vmatpush2.msra.mxu0 0.0
        %807 = vmatprep.subr.mxu0 0.0
        %808 = vmatpush2.msra.mxu0 0.0
        %809 = vmatprep.subr.mxu0 0.0
        %810 = vmatpush2.msra.mxu0 0.0
        %811 = vmatprep.subr.mxu0 0.0
        %812 = vmatpush2.msra.mxu0 0.0
        %813 = vmatprep.subr.mxu0 0.0
        %814 = vmatpush2.msra.mxu0 0.0
        %815 = vmatprep.subr.mxu0 0.0
        %816 = vmatpush2.msra.mxu0 0.0
        %817 = vmatprep.subr.mxu0 0.0
        %818 = vmatpush2.msra.mxu0 0.0
        %819 = vmatprep.subr.mxu0 0.0
        %820 = vmatpush2.msra.mxu0 0.0
        %821 = vmatprep.subr.mxu0 0.0
        %822 = vmatpush2.msra.mxu0 0.0
        %823 = vmatprep.subr.mxu0 0.0
        %824 = vmatpush2.msra.mxu0 0.0
        %825 = vmatprep.subr.mxu0 0.0
        %826 = vmatpush2.msra.mxu0 0.0
        %827 = vmatprep.subr.mxu0 0.0
        %828 = vmatpush2.msra.mxu0 0.0
        %829 = vmatprep.subr.mxu0 0.0
        %830 = vmatpush2.msra.mxu0 0.0
        %831 = vmatprep.subr.mxu0 0.0
        %832 = vmatpush2.msra.mxu0 0.0
        %833 = vmatprep.subr.mxu0 0.0
        %834 = vmatpush2.msra.mxu0 0.0
        %835 = vmatprep.subr.mxu0 0.0
        %836 = vmatpush2.msra.mxu0 0.0
        %837 = vmatprep.mubr.f32.mxu0 0.0
        %838 = vmatmul.mubr.f32.gmra.mxu0 %v762
        %v839 = vpop.f32.mrf.mxu0
        %v840 = vadd.f32 0.0, %v839
        %v841 = vpop.f32.mrf.mxu0
        %842 = vmatprep.mubr.f32.mxu0 0.0
        %843 = vmatmul.mubr.f32.gmra.mxu0 %v765
        %v844 = vpop.f32.mrf.mxu0
        %v845 = vadd.f32 0.0, %v844
        %v846 = vpop.f32.mrf.mxu0
        %847 = vmatprep.mubr.f32.mxu0 0.0
        %848 = vmatmul.mubr.f32.gmra.mxu0 %v768
        %v849 = vpop.f32.mrf.mxu0
        %v850 = vadd.f32 0.0, %v849
        %v851 = vpop.f32.mrf.mxu0
        %852 = vmatprep.mubr.f32.mxu0 0.0
        %853 = vmatmul.mubr.f32.gmra.mxu0 %v771
        %v854 = vpop.f32.mrf.mxu0
        %v855 = vadd.f32 0.0, %v854
        %v856 = vpop.f32.mrf.mxu0
        %857 = vdwg.mxu0
        %v858 = vadd.f32 %v349, %v840
        %v859 = vadd.f32 %v350, %v845
        %v860 = vadd.f32 %v351, %v850
        %v861 = vadd.f32 %v352, %v855
        %v862 = vmul.f32 %v858, %v858
        %v863 = vmul.f32 %v859, %v859
        %v864 = vmul.f32 %v860, %v860
        %v865 = vmul.f32 %v861, %v861
        %v866 = vsel %vm397, %v862, 0.0
        %v867 = vsel %vm397, %v863, 0.0
        %v868 = vadd.f32 %v866, %v867
        %v869 = vrot.slane %v868, 4
        %v870 = vadd.f32 %v868, %v869
        %v871 = vrot.slane %v870, 2
        %v872 = vadd.f32 %v870, %v871
        %v873 = vrot.slane %v872, 1
        %v874 = vadd.f32 %v872, %v873
        %v875 = vsel %vm397, %v864, 0.0
        %v876 = vsel %vm397, %v865, 0.0
        %v877 = vadd.f32 %v875, %v876
        %v878 = vrot.slane %v877, 4
        %v879 = vadd.f32 %v877, %v878
        %v880 = vrot.slane %v879, 2
        %v881 = vadd.f32 %v879, %v880
        %v882 = vrot.slane %v881, 1
        %v883 = vadd.f32 %v881, %v882
        %v884 = vsel %vm396, 1, 0
        %vm885 = vcmp.eq.s32.totalorder %v884, 1
        %v886 = vsel %vm885, %v874, 0.0
        %v887 = vsel %vm885, %v883, 0.0
        %v888 = vsel %vm397, %v886, 0.0
        %889 = vadd.xlane.f32.xlu0 %v888
        %v890 = vpop.xlane.xlu0 %889
        %v891 = vsel %vm397, %v887, 0.0
        %892 = vadd.xlane.f32.xlu0 %v891
        %v893 = vpop.xlane.xlu0 %892
        %v894 = vsel %vm885, 0.0, %v874
        %v895 = vsel %vm885, 0.0, %v883
        %v896 = vsel %vm397, %v894, 0.0
        %897 = vadd.xlane.f32.xlu0 %v896
        %v898 = vpop.xlane.xlu0 %897
        %v899 = vsel %vm397, %v895, 0.0
        %900 = vadd.xlane.f32.xlu0 %v899
        %v901 = vpop.xlane.xlu0 %900
        %v902 = vsel %vm885, %v890, %v898
        %v903 = vsel %vm885, %v893, %v901
        %v904 = vadd.f32 %v902, 1e-05
        %v905 = vadd.f32 %v903, 1e-05
        %v906 = vrsqrt.pop %v904
        %v907 = vrsqrt.pop %v905
        %v908 = vmul.f32 %v858, %v906
        %v909 = vmul.f32 %v859, %v906
        %v910 = vmul.f32 %v860, %v907
        %v911 = vmul.f32 %v861, %v907
        %v913 = vsel %vm397, %v908, 0
        %v916 = vsel %vm397, %v909, 0
        %v919 = vsel %vm397, %v910, 0
        %v922 = vsel %vm397, %v911, 0
        %v925 = vsel %vm397, %v353, 0
        %v928 = vsel %vm397, %v354, 0
        %930 = vmatprep.subr.mxu0 0.0
        %931 = vmatpush1.msra.mxu0 0.0
        %932 = vmatprep.subr.mxu0 0.0
        %933 = vmatpush1.msra.mxu0 0.0
        %934 = vmatprep.subr.mxu0 0.0
        %935 = vmatpush1.msra.mxu0 0.0
        %936 = vmatprep.subr.mxu0 0.0
        %937 = vmatpush1.msra.mxu0 0.0
        %938 = vmatprep.subr.mxu0 0.0
        %939 = vmatpush1.msra.mxu0 0.0
        %940 = vmatprep.subr.mxu0 0.0
        %941 = vmatpush1.msra.mxu0 0.0
        %942 = vmatprep.subr.mxu0 0.0
        %943 = vmatpush1.msra.mxu0 0.0
        %944 = vmatprep.subr.mxu0 0.0
        %945 = vmatpush1.msra.mxu0 0.0
        %946 = vmatprep.subr.mxu0 %v388
        %947 = vmatpush1.msra.mxu0 %v387
        %948 = vmatprep.subr.mxu0 %v386
        %949 = vmatpush1.msra.mxu0 %v385
        %950 = vmatprep.subr.mxu0 %v384
        %951 = vmatpush1.msra.mxu0 %v383
        %952 = vmatprep.subr.mxu0 %v382
        %953 = vmatpush1.msra.mxu0 %v381
        %954 = vmatprep.subr.mxu0 %v380
        %955 = vmatpush1.msra.mxu0 %v379
        %956 = vmatprep.subr.mxu0 %v378
        %957 = vmatpush1.msra.mxu0 %v377
        %958 = vmatprep.subr.mxu0 %v376
        %959 = vmatpush1.msra.mxu0 %v375
        %960 = vmatprep.subr.mxu0 %v374
        %961 = vmatpush1.msra.mxu0 %v373
        %962 = vmatprep.subr.mxu0 0.0
        %963 = vmatpush2.msra.mxu0 0.0
        %964 = vmatprep.subr.mxu0 0.0
        %965 = vmatpush2.msra.mxu0 0.0
        %966 = vmatprep.subr.mxu0 0.0
        %967 = vmatpush2.msra.mxu0 0.0
        %968 = vmatprep.subr.mxu0 0.0
        %969 = vmatpush2.msra.mxu0 0.0
        %970 = vmatprep.subr.mxu0 0.0
        %971 = vmatpush2.msra.mxu0 0.0
        %972 = vmatprep.subr.mxu0 0.0
        %973 = vmatpush2.msra.mxu0 0.0
        %974 = vmatprep.subr.mxu0 0.0
        %975 = vmatpush2.msra.mxu0 0.0
        %976 = vmatprep.subr.mxu0 0.0
        %977 = vmatpush2.msra.mxu0 0.0
        %978 = vmatprep.subr.mxu0 0.0
        %979 = vmatpush2.msra.mxu0 0.0
        %980 = vmatprep.subr.mxu0 0.0
        %981 = vmatpush2.msra.mxu0 0.0
        %982 = vmatprep.subr.mxu0 0.0
        %983 = vmatpush2.msra.mxu0 0.0
        %984 = vmatprep.subr.mxu0 0.0
        %985 = vmatpush2.msra.mxu0 0.0
        %986 = vmatprep.subr.mxu0 0.0
        %987 = vmatpush2.msra.mxu0 0.0
        %988 = vmatprep.subr.mxu0 0.0
        %989 = vmatpush2.msra.mxu0 0.0
        %990 = vmatprep.subr.mxu0 0.0
        %991 = vmatpush2.msra.mxu0 0.0
        %992 = vmatprep.subr.mxu0 0.0
        %993 = vmatpush2.msra.mxu0 0.0
        %994 = vmatprep.mubr.f32.mxu0 0.0
        %995 = vmatmul.mubr.f32.gmra.mxu0 %v913
        %v996 = vpop.f32.mrf.mxu0
        %v997 = vadd.f32 0.0, %v996
        %v998 = vpop.f32.mrf.mxu0
        %v999 = vadd.f32 0.0, %v998
        %1000 = vmatprep.mubr.f32.mxu0 0.0
        %1001 = vmatmul.mubr.f32.gmra.mxu0 %v916
        %v1002 = vpop.f32.mrf.mxu0
        %v1003 = vadd.f32 0.0, %v1002
        %v1004 = vpop.f32.mrf.mxu0
        %v1005 = vadd.f32 0.0, %v1004
        %1006 = vmatprep.mubr.f32.mxu0 0.0
        %1007 = vmatmul.mubr.f32.gmra.mxu0 %v919
        %v1008 = vpop.f32.mrf.mxu0
        %v1009 = vadd.f32 0.0, %v1008
        %v1010 = vpop.f32.mrf.mxu0
        %v1011 = vadd.f32 0.0, %v1010
        %1012 = vmatprep.mubr.f32.mxu0 0.0
        %1013 = vmatmul.mubr.f32.gmra.mxu0 %v922
        %v1014 = vpop.f32.mrf.mxu0
        %v1015 = vadd.f32 0.0, %v1014
        %v1016 = vpop.f32.mrf.mxu0
        %v1017 = vadd.f32 0.0, %v1016
        %1018 = vmatprep.mubr.f32.mxu0 0.0
        %1019 = vmatmul.mubr.f32.gmra.mxu0 %v925
        %v1020 = vpop.f32.mrf.mxu0
        %v1021 = vadd.f32 0.0, %v1020
        %v1022 = vpop.f32.mrf.mxu0
        %v1023 = vadd.f32 0.0, %v1022
        %1024 = vmatprep.mubr.f32.mxu0 0.0
        %1025 = vmatmul.mubr.f32.gmra.mxu0 %v928
        %v1026 = vpop.f32.mrf.mxu0
        %v1027 = vadd.f32 0.0, %v1026
        %v1028 = vpop.f32.mrf.mxu0
        %v1029 = vadd.f32 0.0, %v1028
        %1030 = vdwg.mxu0
        %v1031 = vmul.f32 %v997, %v997
        %v1032 = vmul.f32 %v999, %v999
        %v1033 = vmul.f32 %v1003, %v1003
        %v1034 = vmul.f32 %v1005, %v1005
        %v1035 = vmul.f32 %v1009, %v1009
        %v1036 = vmul.f32 %v1011, %v1011
        %v1037 = vmul.f32 %v1015, %v1015
        %v1038 = vmul.f32 %v1017, %v1017
        %v1039 = vmul.f32 %v1021, %v1021
        %v1040 = vmul.f32 %v1023, %v1023
        %v1041 = vmul.f32 %v1027, %v1027
        %v1042 = vmul.f32 %v1029, %v1029
        %v1043 = vadd.f32 %v1031, %v1032
        %1044 = vadd.xlane.f32.xlu0 %v1043
        %v1045 = vpop.xlane.xlu0 %1044
        %v1046 = vadd.f32 %v1033, %v1034
        %1047 = vadd.xlane.f32.xlu0 %v1046
        %v1048 = vpop.xlane.xlu0 %1047
        %v1049 = vadd.f32 %v1035, %v1036
        %1050 = vadd.xlane.f32.xlu0 %v1049
        %v1051 = vpop.xlane.xlu0 %1050
        %v1052 = vadd.f32 %v1037, %v1038
        %1053 = vadd.xlane.f32.xlu0 %v1052
        %v1054 = vpop.xlane.xlu0 %1053
        %v1055 = vadd.f32 %v1039, %v1040
        %1056 = vadd.xlane.f32.xlu0 %v1055
        %v1057 = vpop.xlane.xlu0 %1056
        %v1058 = vadd.f32 %v1041, %v1042
        %1059 = vadd.xlane.f32.xlu0 %v1058
        %v1060 = vpop.xlane.xlu0 %1059
        %v1061 = vadd.f32 %v1045, 1e-12
        %v1062 = vadd.f32 %v1048, 1e-12
        %v1063 = vadd.f32 %v1051, 1e-12
        %v1064 = vadd.f32 %v1054, 1e-12
        %v1065 = vadd.f32 %v1057, 1e-12
        %v1066 = vadd.f32 %v1060, 1e-12
        %v1067 = vrsqrt.pop %v1061
        %v1068 = vrsqrt.pop %v1062
        %v1069 = vrsqrt.pop %v1063
        %v1070 = vrsqrt.pop %v1064
        %v1071 = vrsqrt.pop %v1065
        %v1072 = vrsqrt.pop %v1066
        %v1073 = vmul.f32 %v997, %v1067
        %v1074 = vmul.f32 %v999, %v1067
        %v1075 = vmul.f32 %v1003, %v1068
        %v1076 = vmul.f32 %v1005, %v1068
        %v1077 = vmul.f32 %v1009, %v1069
        %v1078 = vmul.f32 %v1011, %v1069
        %v1079 = vmul.f32 %v1015, %v1070
        %v1080 = vmul.f32 %v1017, %v1070
        %v1081 = vmul.f32 %v1021, %v1071
        %v1082 = vmul.f32 %v1023, %v1071
        %v1083 = vmul.f32 %v1027, %v1072
        %v1084 = vmul.f32 %v1029, %v1072
        %v1085 = vmul.f32 %v1081, %v394
        %v1086 = vmul.f32 %v1082, %v395
        %v1087 = vmul.f32 %v1083, %v394
        %v1088 = vmul.f32 %v1084, %v395
        %1089 = vmatprep.subr.mxu0 0.0
        %1090 = vmatpush1.xpose.msra.mxu0 0.0
        %1091 = vmatprep.subr.mxu0 0.0
        %1092 = vmatpush1.xpose.msra.mxu0 0.0
        %1093 = vmatprep.subr.mxu0 0.0
        %1094 = vmatpush1.xpose.msra.mxu0 0.0
        %1095 = vmatprep.subr.mxu0 0.0
        %1096 = vmatpush1.xpose.msra.mxu0 0.0
        %1097 = vmatprep.subr.mxu0 0.0
        %1098 = vmatpush1.xpose.msra.mxu0 0.0
        %1099 = vmatprep.subr.mxu0 0.0
        %1100 = vmatpush1.xpose.msra.mxu0 0.0
        %1101 = vmatprep.subr.mxu0 0.0
        %1102 = vmatpush1.xpose.msra.mxu0 0.0
        %1103 = vmatprep.subr.mxu0 0.0
        %1104 = vmatpush1.xpose.msra.mxu0 0.0
        %1105 = vmatprep.subr.mxu0 0.0
        %1106 = vmatpush1.xpose.msra.mxu0 0.0
        %1107 = vmatprep.subr.mxu0 0.0
        %1108 = vmatpush1.xpose.msra.mxu0 0.0
        %1109 = vmatprep.subr.mxu0 0.0
        %1110 = vmatpush1.xpose.msra.mxu0 0.0
        %1111 = vmatprep.subr.mxu0 0.0
        %1112 = vmatpush1.xpose.msra.mxu0 0.0
        %1113 = vmatprep.subr.mxu0 %v1083
        %1114 = vmatpush1.xpose.msra.mxu0 %v1084
        %1115 = vmatprep.subr.mxu0 %v1081
        %1116 = vmatpush1.xpose.msra.mxu0 %v1082
        %1117 = vmatprep.subr.mxu0 %v1088
        %1118 = vmatpush1.xpose.msra.mxu0 %v1087
        %1119 = vmatprep.subr.mxu0 %v1086
        %1120 = vmatpush1.xpose.msra.mxu0 %v1085
        %1121 = vmatprep.subr.mxu0 0.0
        %1122 = vmatpush2.xpose.msra.mxu0 0.0
        %1123 = vmatprep.subr.mxu0 0.0
        %1124 = vmatpush2.xpose.msra.mxu0 0.0
        %1125 = vmatprep.subr.mxu0 0.0
        %1126 = vmatpush2.xpose.msra.mxu0 0.0
        %1127 = vmatprep.subr.mxu0 0.0
        %1128 = vmatpush2.xpose.msra.mxu0 0.0
        %1129 = vmatprep.subr.mxu0 0.0
        %1130 = vmatpush2.xpose.msra.mxu0 0.0
        %1131 = vmatprep.subr.mxu0 0.0
        %1132 = vmatpush2.xpose.msra.mxu0 0.0
        %1133 = vmatprep.subr.mxu0 0.0
        %1134 = vmatpush2.xpose.msra.mxu0 0.0
        %1135 = vmatprep.subr.mxu0 0.0
        %1136 = vmatpush2.xpose.msra.mxu0 0.0
        %1137 = vmatprep.subr.mxu0 0.0
        %1138 = vmatpush2.xpose.msra.mxu0 0.0
        %1139 = vmatprep.subr.mxu0 0.0
        %1140 = vmatpush2.xpose.msra.mxu0 0.0
        %1141 = vmatprep.subr.mxu0 0.0
        %1142 = vmatpush2.xpose.msra.mxu0 0.0
        %1143 = vmatprep.subr.mxu0 0.0
        %1144 = vmatpush2.xpose.msra.mxu0 0.0
        %1145 = vmatprep.subr.mxu0 0.0
        %1146 = vmatpush2.xpose.msra.mxu0 0.0
        %1147 = vmatprep.subr.mxu0 0.0
        %1148 = vmatpush2.xpose.msra.mxu0 0.0
        %1149 = vmatprep.subr.mxu0 0.0
        %1150 = vmatpush2.xpose.msra.mxu0 0.0
        %1151 = vmatprep.subr.mxu0 0.0
        %1152 = vmatpush2.xpose.msra.mxu0 0.0
        %1153 = vmatprep.mubr.f32.mxu0 %v1074
        %1154 = vmatmul.mubr.f32.gmra.mxu0 %v1073
        %v1155 = vpop.f32.mrf.mxu0
        %v1156 = vadd.f32 0.0, %v1155
        %v1157 = vpop.f32.mrf.mxu0
        %1158 = vmatprep.mubr.f32.mxu0 %v1076
        %1159 = vmatmul.mubr.f32.gmra.mxu0 %v1075
        %v1160 = vpop.f32.mrf.mxu0
        %v1161 = vadd.f32 0.0, %v1160
        %v1162 = vpop.f32.mrf.mxu0
        %1163 = vmatprep.mubr.f32.mxu0 %v1078
        %1164 = vmatmul.mubr.f32.gmra.mxu0 %v1077
        %v1165 = vpop.f32.mrf.mxu0
        %v1166 = vadd.f32 0.0, %v1165
        %v1167 = vpop.f32.mrf.mxu0
        %1168 = vmatprep.mubr.f32.mxu0 %v1080
        %1169 = vmatmul.mubr.f32.gmra.mxu0 %v1079
        %v1170 = vpop.f32.mrf.mxu0
        %v1171 = vadd.f32 0.0, %v1170
        %v1172 = vpop.f32.mrf.mxu0
        %1173 = vdwg.mxu0
        %v1174 = vmul.f32 %v1156, 30.0
        %v1175 = vmul.f32 %v1161, 30.0
        %v1176 = vmul.f32 %v1166, 30.0
        %v1177 = vmul.f32 %v1171, 30.0
        %vm1178 = vcmp.lt.s32.totalorder %v390, 16
        %v1179 = vsel %vm1178, %v1174, -inf
        %v1180 = vsel %vm1178, %v1175, -inf
        %v1181 = vsel %vm1178, %v1176, -inf
        %v1182 = vsel %vm1178, %v1177, -inf
        %v1183 = vsel %vm756, %v1179, -inf
        %1184 = vmax.xlane.f32.xlu0 %v1183
        %v1185 = vpop.xlane.xlu0 %1184
        %v1186 = vsel %vm756, %v1180, -inf
        %1187 = vmax.xlane.f32.xlu0 %v1186
        %v1188 = vpop.xlane.xlu0 %1187
        %v1189 = vsel %vm756, %v1181, -inf
        %1190 = vmax.xlane.f32.xlu0 %v1189
        %v1191 = vpop.xlane.xlu0 %1190
        %v1192 = vsel %vm756, %v1182, -inf
        %1193 = vmax.xlane.f32.xlu0 %v1192
        %v1194 = vpop.xlane.xlu0 %1193
        %v1195 = vsel %vm1178, -inf, %v1174
        %v1196 = vsel %vm1178, -inf, %v1175
        %v1197 = vsel %vm1178, -inf, %v1176
        %v1198 = vsel %vm1178, -inf, %v1177
        %v1199 = vsel %vm756, %v1195, -inf
        %1200 = vmax.xlane.f32.xlu0 %v1199
        %v1201 = vpop.xlane.xlu0 %1200
        %v1202 = vsel %vm756, %v1196, -inf
        %1203 = vmax.xlane.f32.xlu0 %v1202
        %v1204 = vpop.xlane.xlu0 %1203
        %v1205 = vsel %vm756, %v1197, -inf
        %1206 = vmax.xlane.f32.xlu0 %v1205
        %v1207 = vpop.xlane.xlu0 %1206
        %v1208 = vsel %vm756, %v1198, -inf
        %1209 = vmax.xlane.f32.xlu0 %v1208
        %v1210 = vpop.xlane.xlu0 %1209
        %v1211 = vsel %vm1178, %v1185, %v1201
        %v1212 = vsel %vm1178, %v1188, %v1204
        %v1213 = vsel %vm1178, %v1191, %v1207
        %v1214 = vsel %vm1178, %v1194, %v1210
        %v1215 = vsub.f32 %v1174, %v1211
        %v1216 = vsub.f32 %v1175, %v1212
        %v1217 = vsub.f32 %v1176, %v1213
        %v1218 = vsub.f32 %v1177, %v1214
        %v1219 = vmul.f32 %v1215, 1.442695
        %v1220 = vpow.pop %v1219
        %v1221 = vmul.f32 %v1216, 1.442695
        %v1222 = vpow.pop %v1221
        %v1223 = vmul.f32 %v1217, 1.442695
        %v1224 = vpow.pop %v1223
        %v1225 = vmul.f32 %v1218, 1.442695
        %v1226 = vpow.pop %v1225
        %v1227 = vsel %vm1178, %v1220, 0.0
        %v1228 = vsel %vm1178, %v1222, 0.0
        %v1229 = vsel %vm1178, %v1224, 0.0
        %v1230 = vsel %vm1178, %v1226, 0.0
        %v1231 = vsel %vm756, %v1227, 0.0
        %1232 = vadd.xlane.f32.xlu0 %v1231
        %v1233 = vpop.xlane.xlu0 %1232
        %v1234 = vsel %vm756, %v1228, 0.0
        %1235 = vadd.xlane.f32.xlu0 %v1234
        %v1236 = vpop.xlane.xlu0 %1235
        %v1237 = vsel %vm756, %v1229, 0.0
        %1238 = vadd.xlane.f32.xlu0 %v1237
        %v1239 = vpop.xlane.xlu0 %1238
        %v1240 = vsel %vm756, %v1230, 0.0
        %1241 = vadd.xlane.f32.xlu0 %v1240
        %v1242 = vpop.xlane.xlu0 %1241
        %v1243 = vsel %vm1178, 0.0, %v1220
        %v1244 = vsel %vm1178, 0.0, %v1222
        %v1245 = vsel %vm1178, 0.0, %v1224
        %v1246 = vsel %vm1178, 0.0, %v1226
        %v1247 = vsel %vm756, %v1243, 0.0
        %1248 = vadd.xlane.f32.xlu0 %v1247
        %v1249 = vpop.xlane.xlu0 %1248
        %v1250 = vsel %vm756, %v1244, 0.0
        %1251 = vadd.xlane.f32.xlu0 %v1250
        %v1252 = vpop.xlane.xlu0 %1251
        %v1253 = vsel %vm756, %v1245, 0.0
        %1254 = vadd.xlane.f32.xlu0 %v1253
        %v1255 = vpop.xlane.xlu0 %1254
        %v1256 = vsel %vm756, %v1246, 0.0
        %1257 = vadd.xlane.f32.xlu0 %v1256
        %v1258 = vpop.xlane.xlu0 %1257
        %v1259 = vsel %vm1178, %v1233, %v1249
        %v1260 = vsel %vm1178, %v1236, %v1252
        %v1261 = vsel %vm1178, %v1239, %v1255
        %v1262 = vsel %vm1178, %v1242, %v1258
        %v1263 = vrcp.pop %v1259
        %v1264 = vmul.f32 %v1220, %v1263
        %v1265 = vrcp.pop %v1260
        %v1266 = vmul.f32 %v1222, %v1265
        %v1267 = vrcp.pop %v1261
        %v1268 = vmul.f32 %v1224, %v1267
        %v1269 = vrcp.pop %v1262
        %v1270 = vmul.f32 %v1226, %v1269
        %v1271 = vmul.f32 %v353, %v355
        %v1272 = vmul.f32 %v354, %v356
        %1275 = vrot.lane.b32.xlu0 %v1271, 64
        %v1276 = vpop.permute.xlu0 %1275
        %1277 = vrot.lane.b32.xlu0 %v1272, 64
        %v1278 = vpop.permute.xlu0 %1277
        %v1281 = vsel %vm397, %v355, %v1276
        %v1282 = vsel %vm397, %v356, %v1278
        %v1283 = vsub.f32 0.0, %v355
        %v1284 = vsub.f32 0.0, %v356
        %1287 = vrot.lane.b32.xlu0 %v1283, 96
        %v1288 = vpop.permute.xlu0 %1287
        %1289 = vrot.lane.b32.xlu0 %v1284, 96
        %v1290 = vpop.permute.xlu0 %1289
        %1295 = vrot.lane.b32.xlu0 %v355, 32
        %v1296 = vpop.permute.xlu0 %1295
        %1297 = vrot.lane.b32.xlu0 %v356, 32
        %v1298 = vpop.permute.xlu0 %1297
        %v1301 = vsel %vm756, %v1288, %v1296
        %v1302 = vsel %vm756, %v1290, %v1298
        %v1303 = vsub.f32 0.0, %v1271
        %v1304 = vsub.f32 0.0, %v1272
        %1307 = vrot.lane.b32.xlu0 %v1303, 96
        %v1308 = vpop.permute.xlu0 %1307
        %1309 = vrot.lane.b32.xlu0 %v1304, 96
        %v1310 = vpop.permute.xlu0 %1309
        %1313 = vrot.lane.b32.xlu0 %v1271, 32
        %v1314 = vpop.permute.xlu0 %1313
        %1315 = vrot.lane.b32.xlu0 %v1272, 32
        %v1316 = vpop.permute.xlu0 %1315
        %v1319 = vsel %vm756, %v1308, %v1314
        %v1320 = vsel %vm756, %v1310, %v1316
        %1323 = vrot.lane.b32.xlu0 %v1319, 64
        %v1324 = vpop.permute.xlu0 %1323
        %1325 = vrot.lane.b32.xlu0 %v1320, 64
        %v1326 = vpop.permute.xlu0 %1325
        %v1329 = vsel %vm397, %v1301, %v1324
        %v1330 = vsel %vm397, %v1302, %v1326
        %v1332 = vsel %vm756, %v1264, 0
        %v1335 = vsel %vm756, %v1266, 0
        %v1338 = vsel %vm756, %v1268, 0
        %v1341 = vsel %vm756, %v1270, 0
        %1343 = vmatprep.subr.mxu0 0.0
        %1344 = vmatpush1.msra.mxu0 0.0
        %1345 = vmatprep.subr.mxu0 0.0
        %1346 = vmatpush1.msra.mxu0 0.0
        %1347 = vmatprep.subr.mxu0 0.0
        %1348 = vmatpush1.msra.mxu0 0.0
        %1349 = vmatprep.subr.mxu0 0.0
        %1350 = vmatpush1.msra.mxu0 0.0
        %1351 = vmatprep.subr.mxu0 0.0
        %1352 = vmatpush1.msra.mxu0 0.0
        %1353 = vmatprep.subr.mxu0 0.0
        %1354 = vmatpush1.msra.mxu0 0.0
        %1355 = vmatprep.subr.mxu0 0.0
        %1356 = vmatpush1.msra.mxu0 0.0
        %1357 = vmatprep.subr.mxu0 0.0
        %1358 = vmatpush1.msra.mxu0 0.0
        %1359 = vmatprep.subr.mxu0 0.0
        %1360 = vmatpush1.msra.mxu0 0.0
        %1361 = vmatprep.subr.mxu0 0.0
        %1362 = vmatpush1.msra.mxu0 0.0
        %1363 = vmatprep.subr.mxu0 0.0
        %1364 = vmatpush1.msra.mxu0 0.0
        %1365 = vmatprep.subr.mxu0 0.0
        %1366 = vmatpush1.msra.mxu0 0.0
        %1367 = vmatprep.subr.mxu0 0.0
        %1368 = vmatpush1.msra.mxu0 %v1330
        %1369 = vmatprep.subr.mxu0 0.0
        %1370 = vmatpush1.msra.mxu0 %v1329
        %1371 = vmatprep.subr.mxu0 0.0
        %1372 = vmatpush1.msra.mxu0 %v1282
        %1373 = vmatprep.subr.mxu0 0.0
        %1374 = vmatpush1.msra.mxu0 %v1281
        %1375 = vmatprep.subr.mxu0 0.0
        %1376 = vmatpush2.msra.mxu0 0.0
        %1377 = vmatprep.subr.mxu0 0.0
        %1378 = vmatpush2.msra.mxu0 0.0
        %1379 = vmatprep.subr.mxu0 0.0
        %1380 = vmatpush2.msra.mxu0 0.0
        %1381 = vmatprep.subr.mxu0 0.0
        %1382 = vmatpush2.msra.mxu0 0.0
        %1383 = vmatprep.subr.mxu0 0.0
        %1384 = vmatpush2.msra.mxu0 0.0
        %1385 = vmatprep.subr.mxu0 0.0
        %1386 = vmatpush2.msra.mxu0 0.0
        %1387 = vmatprep.subr.mxu0 0.0
        %1388 = vmatpush2.msra.mxu0 0.0
        %1389 = vmatprep.subr.mxu0 0.0
        %1390 = vmatpush2.msra.mxu0 0.0
        %1391 = vmatprep.subr.mxu0 0.0
        %1392 = vmatpush2.msra.mxu0 0.0
        %1393 = vmatprep.subr.mxu0 0.0
        %1394 = vmatpush2.msra.mxu0 0.0
        %1395 = vmatprep.subr.mxu0 0.0
        %1396 = vmatpush2.msra.mxu0 0.0
        %1397 = vmatprep.subr.mxu0 0.0
        %1398 = vmatpush2.msra.mxu0 0.0
        %1399 = vmatprep.subr.mxu0 0.0
        %1400 = vmatpush2.msra.mxu0 0.0
        %1401 = vmatprep.subr.mxu0 0.0
        %1402 = vmatpush2.msra.mxu0 0.0
        %1403 = vmatprep.subr.mxu0 0.0
        %1404 = vmatpush2.msra.mxu0 0.0
        %1405 = vmatprep.subr.mxu0 0.0
        %1406 = vmatpush2.msra.mxu0 0.0
        %1407 = vmatprep.mubr.f32.mxu0 0.0
        %1408 = vmatmul.mubr.f32.gmra.mxu0 %v1332
        %v1409 = vpop.f32.mrf.mxu0
        %v1410 = vadd.f32 0.0, %v1409
        %v1411 = vpop.f32.mrf.mxu0
        %1412 = vmatprep.mubr.f32.mxu0 0.0
        %1413 = vmatmul.mubr.f32.gmra.mxu0 %v1335
        %v1414 = vpop.f32.mrf.mxu0
        %v1415 = vadd.f32 0.0, %v1414
        %v1416 = vpop.f32.mrf.mxu0
        %1417 = vmatprep.mubr.f32.mxu0 0.0
        %1418 = vmatmul.mubr.f32.gmra.mxu0 %v1338
        %v1419 = vpop.f32.mrf.mxu0
        %v1420 = vadd.f32 0.0, %v1419
        %v1421 = vpop.f32.mrf.mxu0
        %1422 = vmatprep.mubr.f32.mxu0 0.0
        %1423 = vmatmul.mubr.f32.gmra.mxu0 %v1341
        %v1424 = vpop.f32.mrf.mxu0
        %v1425 = vadd.f32 0.0, %v1424
        %v1426 = vpop.f32.mrf.mxu0
        %1427 = vdwg.mxu0
        %v1428 = vmul.f32 %v908, %v1410
        %v1429 = vmul.f32 %v909, %v1415
        %v1430 = vmul.f32 %v910, %v1420
        %v1431 = vmul.f32 %v911, %v1425
        %v1432 = vmul.f32 %v1428, %v1428
        %v1433 = vmul.f32 %v1429, %v1429
        %v1434 = vmul.f32 %v1430, %v1430
        %v1435 = vmul.f32 %v1431, %v1431
        %v1436 = vsel %vm397, %v1432, 0.0
        %v1437 = vsel %vm397, %v1433, 0.0
        %v1438 = vadd.f32 %v1436, %v1437
        %v1439 = vrot.slane %v1438, 4
        %v1440 = vadd.f32 %v1438, %v1439
        %v1441 = vrot.slane %v1440, 2
        %v1442 = vadd.f32 %v1440, %v1441
        %v1443 = vrot.slane %v1442, 1
        %v1444 = vadd.f32 %v1442, %v1443
        %v1445 = vsel %vm397, %v1434, 0.0
        %v1446 = vsel %vm397, %v1435, 0.0
        %v1447 = vadd.f32 %v1445, %v1446
        %v1448 = vrot.slane %v1447, 4
        %v1449 = vadd.f32 %v1447, %v1448
        %v1450 = vrot.slane %v1449, 2
        %v1451 = vadd.f32 %v1449, %v1450
        %v1452 = vrot.slane %v1451, 1
        %v1453 = vadd.f32 %v1451, %v1452
        %v1454 = vsel %vm885, %v1444, 0.0
        %v1455 = vsel %vm885, %v1453, 0.0
        %v1456 = vsel %vm397, %v1454, 0.0
        %1457 = vadd.xlane.f32.xlu0 %v1456
        %v1458 = vpop.xlane.xlu0 %1457
        %v1459 = vsel %vm397, %v1455, 0.0
        %1460 = vadd.xlane.f32.xlu0 %v1459
        %v1461 = vpop.xlane.xlu0 %1460
        %v1462 = vsel %vm885, 0.0, %v1444
        %v1463 = vsel %vm885, 0.0, %v1453
        %v1464 = vsel %vm397, %v1462, 0.0
        %1465 = vadd.xlane.f32.xlu0 %v1464
        %v1466 = vpop.xlane.xlu0 %1465
        %v1467 = vsel %vm397, %v1463, 0.0
        %1468 = vadd.xlane.f32.xlu0 %v1467
        %v1469 = vpop.xlane.xlu0 %1468
        %v1470 = vsel %vm885, %v1458, %v1466
        %v1471 = vsel %vm885, %v1461, %v1469
        %v1472 = vadd.f32 %v1470, 1e-05
        %v1473 = vadd.f32 %v1471, 1e-05
        %v1474 = vrsqrt.pop %v1472
        %v1475 = vrsqrt.pop %v1473
        %v1476 = vmul.f32 %v1428, %v1474
        %v1477 = vmul.f32 %v1429, %v1474
        %v1478 = vmul.f32 %v1430, %v1475
        %v1479 = vmul.f32 %v1431, %v1475
        %1484 = vrot.lane.b32.xlu0 %v1410, 64
        %v1485 = vpop.permute.xlu0 %1484
        %1486 = vrot.lane.b32.xlu0 %v1415, 64
        %v1487 = vpop.permute.xlu0 %1486
        %1488 = vrot.lane.b32.xlu0 %v1420, 64
        %v1489 = vpop.permute.xlu0 %1488
        %1490 = vrot.lane.b32.xlu0 %v1425, 64
        %v1491 = vpop.permute.xlu0 %1490
        %v1496 = vadd.f32 %v908, %v1485
        %v1497 = vadd.f32 %v909, %v1487
        %v1498 = vadd.f32 %v910, %v1489
        %v1499 = vadd.f32 %v911, %v1491
        %v1500 = vmul.f32 %v1496, %v1496
        %v1501 = vmul.f32 %v1497, %v1497
        %v1502 = vmul.f32 %v1498, %v1498
        %v1503 = vmul.f32 %v1499, %v1499
        %v1504 = vsel %vm397, %v1500, 0.0
        %v1505 = vsel %vm397, %v1501, 0.0
        %v1506 = vadd.f32 %v1504, %v1505
        %v1507 = vrot.slane %v1506, 4
        %v1508 = vadd.f32 %v1506, %v1507
        %v1509 = vrot.slane %v1508, 2
        %v1510 = vadd.f32 %v1508, %v1509
        %v1511 = vrot.slane %v1510, 1
        %v1512 = vadd.f32 %v1510, %v1511
        %v1513 = vsel %vm397, %v1502, 0.0
        %v1514 = vsel %vm397, %v1503, 0.0
        %v1515 = vadd.f32 %v1513, %v1514
        %v1516 = vrot.slane %v1515, 4
        %v1517 = vadd.f32 %v1515, %v1516
        %v1518 = vrot.slane %v1517, 2
        %v1519 = vadd.f32 %v1517, %v1518
        %v1520 = vrot.slane %v1519, 1
        %v1521 = vadd.f32 %v1519, %v1520
        %v1522 = vsel %vm885, %v1512, 0.0
        %v1523 = vsel %vm885, %v1521, 0.0
        %v1524 = vsel %vm397, %v1522, 0.0
        %1525 = vadd.xlane.f32.xlu0 %v1524
        %v1526 = vpop.xlane.xlu0 %1525
        %v1527 = vsel %vm397, %v1523, 0.0
        %1528 = vadd.xlane.f32.xlu0 %v1527
        %v1529 = vpop.xlane.xlu0 %1528
        %v1530 = vsel %vm885, 0.0, %v1512
        %v1531 = vsel %vm885, 0.0, %v1521
        %v1532 = vsel %vm397, %v1530, 0.0
        %1533 = vadd.xlane.f32.xlu0 %v1532
        %v1534 = vpop.xlane.xlu0 %1533
        %v1535 = vsel %vm397, %v1531, 0.0
        %1536 = vadd.xlane.f32.xlu0 %v1535
        %v1537 = vpop.xlane.xlu0 %1536
        %v1538 = vsel %vm885, %v1526, %v1534
        %v1539 = vsel %vm885, %v1529, %v1537
        %v1540 = vadd.f32 %v1538, 1e-05
        %v1541 = vadd.f32 %v1539, 1e-05
        %v1542 = vrsqrt.pop %v1540
        %v1543 = vrsqrt.pop %v1541
        %v1544 = vmul.f32 %v1496, %v1542
        %v1545 = vmul.f32 %v1497, %v1542
        %v1546 = vmul.f32 %v1498, %v1543
        %v1547 = vmul.f32 %v1499, %v1543
        %v1548 = vadd.f32 %v1476, %v1544
        %v1549 = vadd.f32 %v1477, %v1545
        %v1550 = vadd.f32 %v1478, %v1546
        %v1551 = vadd.f32 %v1479, %v1547
        %v1552 = vmul.f32 %v1548, %v1548
        %v1553 = vmul.f32 %v1549, %v1549
        %v1554 = vmul.f32 %v1550, %v1550
        %v1555 = vmul.f32 %v1551, %v1551
        %v1556 = vsel %vm397, %v1552, 0.0
        %v1557 = vsel %vm397, %v1553, 0.0
        %v1558 = vadd.f32 %v1556, %v1557
        %v1559 = vrot.slane %v1558, 4
        %v1560 = vadd.f32 %v1558, %v1559
        %v1561 = vrot.slane %v1560, 2
        %v1562 = vadd.f32 %v1560, %v1561
        %v1563 = vrot.slane %v1562, 1
        %v1564 = vadd.f32 %v1562, %v1563
        %v1565 = vsel %vm397, %v1554, 0.0
        %v1566 = vsel %vm397, %v1555, 0.0
        %v1567 = vadd.f32 %v1565, %v1566
        %v1568 = vrot.slane %v1567, 4
        %v1569 = vadd.f32 %v1567, %v1568
        %v1570 = vrot.slane %v1569, 2
        %v1571 = vadd.f32 %v1569, %v1570
        %v1572 = vrot.slane %v1571, 1
        %v1573 = vadd.f32 %v1571, %v1572
        %v1574 = vsel %vm885, %v1564, 0.0
        %v1575 = vsel %vm885, %v1573, 0.0
        %v1576 = vsel %vm397, %v1574, 0.0
        %1577 = vadd.xlane.f32.xlu0 %v1576
        %v1578 = vpop.xlane.xlu0 %1577
        %v1579 = vsel %vm397, %v1575, 0.0
        %1580 = vadd.xlane.f32.xlu0 %v1579
        %v1581 = vpop.xlane.xlu0 %1580
        %v1582 = vsel %vm885, 0.0, %v1564
        %v1583 = vsel %vm885, 0.0, %v1573
        %v1584 = vsel %vm397, %v1582, 0.0
        %1585 = vadd.xlane.f32.xlu0 %v1584
        %v1586 = vpop.xlane.xlu0 %1585
        %v1587 = vsel %vm397, %v1583, 0.0
        %1588 = vadd.xlane.f32.xlu0 %v1587
        %v1589 = vpop.xlane.xlu0 %1588
        %v1590 = vsel %vm885, %v1578, %v1586
        %v1591 = vsel %vm885, %v1581, %v1589
        %v1592 = vadd.f32 %v1590, 1e-05
        %v1593 = vadd.f32 %v1591, 1e-05
        %v1594 = vrsqrt.pop %v1592
        %v1595 = vrsqrt.pop %v1593
        %v1596 = vmul.f32 %v1548, %v1594
        %v1597 = vmul.f32 %v1549, %v1594
        %v1598 = vmul.f32 %v1550, %v1595
        %v1599 = vmul.f32 %v1551, %v1595
        %1600 = vst.msk [vmem:[%s348] sm:$0xff] %vm397, %v1596
        %1601 = vst.msk [vmem:[%s348 + $0x8] sm:$0xff] %vm397, %v1597
        %1602 = vst.msk [vmem:[%s348 + $0x10] sm:$0xff] %vm397, %v1598
        %1603 = vst.msk [vmem:[%s348 + $0x18] sm:$0xff] %vm397, %v1599
        %s1604 = sand.u32 %s154, 1
        %s1605 = scalar_lea.sflag [#allocation4], %s1604
        %s1606 = sand.u32 %s154, 1
        %s1607 = smul.addr %s1606, 32
        %s1608 = scalar_lea.vmem [#allocation11], %s1607
        // Predicated region
        $region61: #{forward_packed.1} parent=39 // pred_check
          %p1609 = pneg %p164
        $region62: #{forward_packed.1} parent=39 // pred_check_branch
          %1611 = sbr.rel (%p1609) target = $region64
        $region63: #{forward_packed.1} parent=39 // pred_region
          %s1613 = ssub.s32 512, 512
          %1614 = vsyncadd %s1605, %s1613
          %s1615 = smul.addr %s26, 4
          %s1616 = smul.addr %s1615, 128
          %s1617 = scalar_lea.hbm %s5, %s1616
          %s1618 = sshll.u32 %s1608, 4
          %s1619 = int_to_ptr.vmem [resolvable:$true] %s1618
          %1624 = dma.vmem_to_hbm [thread:$0]  %s1619, 512, %s1617, %s1605, 128, 128, 8
        $region64: #{forward_packed.1} parent=39 // pred_fallthru
          _
      $region40: #{forward_packed.1} parent=5 // pred_fallthru
        _
      %p1625 = scmp.le.s32.totalorder 2, %s21
      // Predicated region
      $region65: #{forward_packed.1} parent=5 // pred_check
        %p1626 = pneg %p1625
      $region66: #{forward_packed.1} parent=5 // pred_check_branch
        %1628 = sbr.rel (%p1626) target = $region68
      $region67: #{forward_packed.1} parent=5 // pred_region
        %s1629 = ssub.s32 %s21, 2
        // Predicated region
        $region69: #{forward_packed.1} parent=67 // pred_check
          %p1630 = pneg %p170
        $region70: #{forward_packed.1} parent=67 // pred_check_branch
          %1632 = sbr.rel (%p1630) target = $region72
        $region71: #{forward_packed.1} parent=67 // pred_region
          %s1633 = sand.u32 %s155, 1
          %s1634 = scalar_lea.sflag [#allocation4], %s1633
          %s1635 = sand.u32 %s155, 1
          %s1636 = smul.addr %s1635, 32
          %s1637 = scalar_lea.vmem [#allocation11], %s1636
          %1638 = dma.done %s1634, 512
        $region72: #{forward_packed.1} parent=67 // pred_fallthru
          _
      $region68: #{forward_packed.1} parent=5 // pred_fallthru
        _
    $region6: #{forward_packed.1} parent=1 // loop_footer
      %s25 = sadd.s32 1, %s21
    $region7: #{forward_packed.1} parent=1 // loop_footer_branch
      %20 = sbr.rel target = $region3
    $region8: #{forward_packed.1} parent=1 // loop_exit
      _
    %1639 = vsyncpa [#allocation3], 1
    %s1640 = scalar_lea.sflag [#allocation3], 1
    %1641 = vsyncpa %s1640, 1
    %1642 = vsyncpa [#allocation6], 1
    %s1643 = scalar_lea.sflag [#allocation6], 1
    %1644 = vsyncpa %s1643, 1
    %1645 = vsyncpa [#allocation9], 1
    %1646 = vsyncpa [#allocation4], 1
    %s1647 = scalar_lea.sflag [#allocation4], 1
    %1648 = vsyncpa %s1647, 1

</llo_original>
